<compile_context>
chip_gen: v7x
topology: tpu7x:2x2x1
jax: 0.10.0
libtpu: 0.0.40
codegen_flags: <defaults>
</compile_context>

<pallas_src>
import jax
import jax.numpy as jnp
import numpy as np
from jax.experimental import pallas as pl
from jax.experimental.pallas import tpu as pltpu

XATU_LENGTH = 30
UNROLL = 4  # recurrence steps per chunk (manual unroll + lane-packing factor)


# ----------------------------------------------------------------------------
# Fused Pallas kernel: one program runs all three LSTM recurrences
# ----------------------------------------------------------------------------
def fused_lstm_kernel(gx_ref, w_hh_ref, out_ref):
    """PyTorch gate order (i, f, g, o), zero initial state.

    gx_ref:   (n_chunk, L, UNROLL*B, 4H)  precomputed x @ W_ih + b, chunk-packed
    w_hh_ref: (L, H, 4H)                  recurrent weights, transposed
    out_ref:  (n_chunk, L, B, UNROLL*H)   hidden states, UNROLL steps lane-packed
    """
    n_chunk, n_lstm = gx_ref.shape[0], gx_ref.shape[1]
    H = w_hh_ref.shape[1]
    B = out_ref.shape[2]

    # Load the three recurrent weight matrices once: 3 x (H,4H) f32 ~ 12 vregs,
    # loop-invariant, kept resident across the whole recurrence.
    ws = tuple(w_hh_ref[l] for l in range(n_lstm))

    def cell(gate_x, w_hh, h, c):
        # Only the recurrent matmul sits on the serial critical path; gate_x is
        # a static slice of the already-loaded chunk.
        gates = gate_x + jnp.dot(h, w_hh, preferred_element_type=jnp.float32)
        # Two full-vreg EUP passes over (B, 4H=128); gate split is a lane slice.
        sg = jax.nn.sigmoid(gates)
        th = jnp.tanh(gates)
        i = sg[:, 0 * H:1 * H]
        f = sg[:, 1 * H:2 * H]
        g = th[:, 2 * H:3 * H]
        o = sg[:, 3 * H:4 * H]
        c_new = f * c + i * g
        h_new = o * jnp.tanh(c_new)
        return h_new, c_new

    def chunk_body(ci, states):
        # One dynamic-index load per chunk; each LSTM's (UNROLL*B, 4H) slab is a
        # full (8,128) f32 tile.  Per-step accesses below are static slices.
        g_chunk = gx_ref[ci]
        outs = [[] for _ in range(n_lstm)]
        for u in range(UNROLL):                       # manual unroll (static)
            new_states = []
            for l in range(n_lstm):                   # three independent cells
                h, c = states[l]
                h, c = cell(g_chunk[l, u * B:(u + 1) * B, :], ws[l], h, c)
                new_states.append((h, c))
                outs[l].append(h)
            states = tuple(new_states)
        # One lane-dense (B, UNROLL*H = 128) row per LSTM, stored once per chunk.
        out_ref[ci] = jnp.stack(
            [jnp.concatenate(outs[l], axis=-1) for l in range(n_lstm)], axis=0)
        return states

    zero = jnp.zeros((B, H), jnp.float32)
    init = tuple((zero, zero) for _ in range(n_lstm))
    jax.lax.fori_loop(0, n_chunk, chunk_body, init)


# ----------------------------------------------------------------------------
# Pallas wrapper: pack inputs, single fused call, unpack outputs
# ----------------------------------------------------------------------------
def _pad_time_to(x_btf, t_target):
    return jnp.pad(x_btf, ((0, 0), (0, t_target - x_btf.shape[1]), (0, 0)))


def fused_lstm_pallas(xs, lstm_params, hidden_size):
    """xs: list of (B, T_l, F) inputs. lstm_params: list of (w_ih, w_hh, b_ih, b_hh)
    in PyTorch shapes.  Returns list of (B, T_l, H) hidden-state sequences."""
    B = xs[0].shape[0]
    H = hidden_size
    n_lstm = len(xs)
    lens = [int(x.shape[1]) for x in xs]

    tmax_pad = -(-max(lens) // UNROLL) * UNROLL
    n_chunk = tmax_pad // UNROLL

    # Stack batch-major, zero-padded to a common length: (L, B, Tp, F)
    x_stack = jnp.stack([_pad_time_to(x, tmax_pad) for x in xs], axis=0)
    w_ih_stack = jnp.stack([p[0].T for p in lstm_params], axis=0)     # (L, F, 4H)
    w_hh_stack = jnp.stack([p[1].T for p in lstm_params], axis=0)     # (L, H, 4H)
    b_stack = jnp.stack([p[2] + p[3] for p in lstm_params], axis=0)   # (L, 4H)

    # Hoisted input projection: one batched matmul instead of T tiny matmuls
    # inside the serial recurrence.  Left to XLA (fuses with surrounding glue).
    gx = jnp.einsum("lbtf,lfg->lbtg", x_stack, w_ih_stack) + b_stack[:, None, None, :]

    # Repack so each (chunk, lstm) slab is one full (8,128) f32 tile:
    # (L, B, nc, U, 4H) -> (nc, L, U, B, 4H) -> (nc, L, U*B, 4H)
    gx = gx.reshape(n_lstm, B, n_chunk, UNROLL, 4 * H)
    gx = jnp.transpose(gx, (2, 0, 3, 1, 4)).reshape(n_chunk, n_lstm, UNROLL * B, 4 * H)

    out_packed = pl.pallas_call(
        fused_lstm_kernel,
        out_shape=jax.ShapeDtypeStruct((n_chunk, n_lstm, B, UNROLL * H), jnp.float32),
        grid=(1,),
        in_specs=[
            pl.BlockSpec((n_chunk, n_lstm, UNROLL * B, 4 * H),
                         lambda i: (0, 0, 0, 0)),
            pl.BlockSpec((n_lstm, H, 4 * H), lambda i: (0, 0, 0)),
        ],
        out_specs=pl.BlockSpec((n_chunk, n_lstm, B, UNROLL * H),
                               lambda i: (0, 0, 0, 0)),
        compiler_params=pltpu.CompilerParams(dimension_semantics=("arbitrary",)),
    )(gx, w_hh_stack)

    # Unpack lane-packed output: (nc, L, B, U, H) -> (L, B, nc*U, H), then slice
    # each sequence back to its true length (drops the padded-tail garbage).
    out = out_packed.reshape(n_chunk, n_lstm, B, UNROLL, H)
    out = jnp.transpose(out, (1, 2, 0, 3, 4)).reshape(n_lstm, B, n_chunk * UNROLL, H)
    return [out[l, :, :lens[l], :] for l in range(n_lstm)]


# ----------------------------------------------------------------------------
# Plain-JAX glue (pooling / repeat_interleave / slicing / tiny projection)
# ----------------------------------------------------------------------------
def avg_pool_time(x, k):
    """nn.AvgPool1d(k, ceil_mode=True) along the time axis of (B, T, F); with
    padding=0 the last partial window is averaged over valid elements only."""
    B, T, F = x.shape
    To = -(-T // k)
    pad = To * k - T
    xp = jnp.pad(x, ((0, 0), (0, pad), (0, 0)))
    s = xp.reshape(B, To, k, F).sum(axis=2)
    counts = jnp.minimum(k, T - jnp.arange(To) * k).astype(jnp.float32)
    return s / counts[None, :, None]


def forward_pallas(features, params):
    nf = params["num_features"]
    x = features[:, :, :nf]                               # feature_ids is None path
    B, T, _ = x.shape
    H = params["hidden_size"]

    xs = [x, avg_pool_time(x, 10), avg_pool_time(x, 60)]
    lstm_params = [params["lstm_1"], params["lstm_10"], params["lstm_60"]]
    out1, out10, out60 = fused_lstm_pallas(xs, lstm_params, H)

    out10 = jnp.repeat(out10, 10, axis=1)[:, :T, :]
    out60 = jnp.repeat(out60, 60, axis=1)[:, :T, :]

    cat = jnp.concatenate([out1, out10, out60], axis=-1)  # (B, T, 3H)
    # Linear is per-timestep, so slicing before projecting equals the PyTorch
    # project-then-slice.  The (B*30, 3H) @ (3H, 1) + sigmoid is left to XLA.
    cat = cat[:, -XATU_LENGTH:, :]
    pw, pb = params["proj"]
    return jax.nn.sigmoid(cat @ pw.T + pb)                # (B, XATU_LENGTH, 1)


# ----------------------------------------------------------------------------
# Pure-JAX reference (mirrors the PyTorch forward) for validation
# ----------------------------------------------------------------------------
def lstm_ref(x, w_ih, w_hh, b_ih, b_hh):
    B, _, _ = x.shape
    H = w_hh.shape[1]

    def step(carry, x_t):
        h, c = carry
        gates = x_t @ w_ih.T + h @ w_hh.T + b_ih + b_hh
        i, f, g, o = jnp.split(gates, 4, axis=-1)
        c = jax.nn.sigmoid(f) * c + jax.nn.sigmoid(i) * jnp.tanh(g)
        h = jax.nn.sigmoid(o) * jnp.tanh(c)
        return (h, c), h

    init = (jnp.zeros((B, H), jnp.float32), jnp.zeros((B, H), jnp.float32))
    _, hs = jax.lax.scan(step, init, jnp.transpose(x, (1, 0, 2)))
    return jnp.transpose(hs, (1, 0, 2))


def forward_ref(features, params):
    nf = params["num_features"]
    x = features[:, :, :nf]
    T = x.shape[1]
    out1 = lstm_ref(x, *params["lstm_1"])
    out10 = jnp.repeat(lstm_ref(avg_pool_time(x, 10), *params["lstm_10"]), 10, axis=1)[:, :T, :]
    out60 = jnp.repeat(lstm_ref(avg_pool_time(x, 60), *params["lstm_60"]), 60, axis=1)[:, :T, :]
    cat = jnp.concatenate([out1, out10, out60], axis=-1)
    pw, pb = params["proj"]
    out = cat @ pw.T + pb
    return jax.nn.sigmoid(out[:, -XATU_LENGTH:, :])


# ----------------------------------------------------------------------------
# Deterministic parameter init (PyTorch shapes, synthetic values)
# ----------------------------------------------------------------------------
def init_params(key, num_features, hidden_size):
    def uni(k, shape, scale):
        return jax.random.uniform(k, shape, jnp.float32, -scale, scale)

    ks = jax.random.split(key, 14)
    s = 1.0 / float(np.sqrt(hidden_size))
    sp = 1.0 / float(np.sqrt(3 * hidden_size))
    params = {"num_features": num_features, "hidden_size": hidden_size}
    idx = 0
    for name in ("lstm_1", "lstm_10", "lstm_60"):
        w_ih = uni(ks[idx], (4 * hidden_size, num_features), s); idx += 1
        w_hh = uni(ks[idx], (4 * hidden_size, hidden_size), s); idx += 1
        b_ih = uni(ks[idx], (4 * hidden_size,), s); idx += 1
        b_hh = uni(ks[idx], (4 * hidden_size,), s); idx += 1
        params[name] = (w_ih, w_hh, b_ih, b_hh)
    pw = uni(ks[idx], (1, 3 * hidden_size), sp); idx += 1
    pb = uni(ks[idx], (1,), sp)
    params["proj"] = (pw, pb)
    return params


# ----------------------------------------------------------------------------
if __name__ == "__main__":
    key = jax.random.PRNGKey(0)
    pkey, xkey = jax.random.split(key)

    num_features, hidden_size = 4, 32
    B, T, F_total = 2, 64, 6            # small shapes; T exercises ceil_mode pooling

    params = init_params(pkey, num_features, hidden_size)
    features = jax.random.normal(xkey, (B, T, F_total), jnp.float32)

    out = forward_pallas(features, params)
    out = jax.block_until_ready(out)

    ref = forward_ref(features, params)
    assert out.shape == (B, XATU_LENGTH, 1), out.shape
    np.testing.assert_allclose(np.asarray(out), np.asarray(ref), atol=1e-3, rtol=1e-3)

    print("KERNEL_OK")
</pallas_src>

<mosaic_0001>
module attributes {stable_mosaic.version = 11 : i64} {
  func.func @fused_lstm_kernel(%arg0: i32, %arg1: memref<16x3x8x128xf32, #tpu.memory_space<vmem>>, %arg2: memref<3x32x128xf32, #tpu.memory_space<vmem>>, %arg3: memref<16x3x2x128xf32, #tpu.memory_space<vmem>>) attributes {dimension_semantics = [#tpu.dimension_semantics<arbitrary>], iteration_bounds = array<i64: 1>, scalar_prefetch = 0 : i64, scratch_operands = 0 : i64, tpu.core_type = #tpu.core_type<tc>, window_params = [{pipeline_mode = #tpu.pipeline_mode<synchronous>, transform_indices = @transform_0, window_bounds = array<i64: 16, 3, 8, 128>}, {pipeline_mode = #tpu.pipeline_mode<synchronous>, transform_indices = @transform_1, window_bounds = array<i64: 3, 32, 128>}, {pipeline_mode = #tpu.pipeline_mode<synchronous>, transform_indices = @transform_2, window_bounds = array<i64: 16, 3, 2, 128>}]} {
    %c0 = arith.constant 0 : index
    %c0_0 = arith.constant 0 : index
    %c0_1 = arith.constant 0 : index
    %0 = vector.load %arg2[%c0, %c0_0, %c0_1] : memref<3x32x128xf32, #tpu.memory_space<vmem>>, vector<1x32x128xf32>
    %1 = vector.shape_cast %0 : vector<1x32x128xf32> to vector<32x128xf32>
    %c1 = arith.constant 1 : index
    %c0_2 = arith.constant 0 : index
    %c0_3 = arith.constant 0 : index
    %2 = vector.load %arg2[%c1, %c0_2, %c0_3] : memref<3x32x128xf32, #tpu.memory_space<vmem>>, vector<1x32x128xf32>
    %3 = vector.shape_cast %2 : vector<1x32x128xf32> to vector<32x128xf32>
    %c2 = arith.constant 2 : index
    %c0_4 = arith.constant 0 : index
    %c0_5 = arith.constant 0 : index
    %4 = vector.load %arg2[%c2, %c0_4, %c0_5] : memref<3x32x128xf32, #tpu.memory_space<vmem>>, vector<1x32x128xf32>
    %5 = vector.shape_cast %4 : vector<1x32x128xf32> to vector<32x128xf32>
    %cst = arith.constant 0.000000e+00 : f32
    %6 = vector.broadcast %cst : f32 to vector<2x32xf32>
    %c0_i32 = arith.constant 0 : i32
    %c16_i32 = arith.constant 16 : i32
    %7 = arith.addi %c0_i32, %c16_i32 : i32
    %c1_i32 = arith.constant 1 : i32
    %8:6 = scf.for %arg4 = %c0_i32 to %7 step %c1_i32 iter_args(%arg5 = %6, %arg6 = %6, %arg7 = %6, %arg8 = %6, %arg9 = %6, %arg10 = %6) -> (vector<2x32xf32>, vector<2x32xf32>, vector<2x32xf32>, vector<2x32xf32>, vector<2x32xf32>, vector<2x32xf32>)  : i32 {
      %9 = arith.index_cast %arg4 : i32 to index
      %c0_7 = arith.constant 0 : index
      %c0_8 = arith.constant 0 : index
      %c0_9 = arith.constant 0 : index
      %10 = vector.load %arg1[%9, %c0_7, %c0_8, %c0_9] : memref<16x3x8x128xf32, #tpu.memory_space<vmem>>, vector<1x3x8x128xf32>
      %11 = vector.shape_cast %10 : vector<1x3x8x128xf32> to vector<3x8x128xf32>
      %12 = vector.extract_strided_slice %11 {offsets = [0, 0, 0], sizes = [1, 2, 128], strides = [1, 1, 1]} : vector<3x8x128xf32> to vector<1x2x128xf32>
      %13 = vector.shape_cast %12 : vector<1x2x128xf32> to vector<2x128xf32>
      %cst_10 = arith.constant dense<0.000000e+00> : vector<2x128xf32>
      %14 = tpu.matmul %arg5, %1, %cst_10 {dimension_numbers = #tpu.dot_dimension_numbers<[1], [0], [0], [1], [0, 0, 1, 1], [], []>} : vector<2x32xf32>, vector<32x128xf32>, vector<2x128xf32> -> vector<2x128xf32>
      %15 = arith.addf %13, %14 : vector<2x128xf32>
      %16 = arith.negf %15 : vector<2x128xf32>
      %17 = math.exp %16 : vector<2x128xf32>
      %cst_11 = arith.constant 1.000000e+00 : f32
      %18 = vector.broadcast %cst_11 : f32 to vector<2x128xf32>
      %19 = arith.addf %18, %17 : vector<2x128xf32>
      %20 = arith.divf %18, %19 : vector<2x128xf32>
      %21 = math.tanh %15 : vector<2x128xf32>
      %22 = vector.extract_strided_slice %20 {offsets = [0, 0], sizes = [2, 32], strides = [1, 1]} : vector<2x128xf32> to vector<2x32xf32>
      %23 = vector.extract_strided_slice %20 {offsets = [0, 32], sizes = [2, 32], strides = [1, 1]} : vector<2x128xf32> to vector<2x32xf32>
      %24 = vector.extract_strided_slice %21 {offsets = [0, 64], sizes = [2, 32], strides = [1, 1]} : vector<2x128xf32> to vector<2x32xf32>
      %25 = vector.extract_strided_slice %20 {offsets = [0, 96], sizes = [2, 32], strides = [1, 1]} : vector<2x128xf32> to vector<2x32xf32>
      %26 = arith.mulf %23, %arg6 : vector<2x32xf32>
      %27 = arith.mulf %22, %24 : vector<2x32xf32>
      %28 = arith.addf %26, %27 : vector<2x32xf32>
      %29 = math.tanh %28 : vector<2x32xf32>
      %30 = arith.mulf %25, %29 : vector<2x32xf32>
      %31 = vector.extract_strided_slice %11 {offsets = [1, 0, 0], sizes = [1, 2, 128], strides = [1, 1, 1]} : vector<3x8x128xf32> to vector<1x2x128xf32>
      %32 = vector.shape_cast %31 : vector<1x2x128xf32> to vector<2x128xf32>
      %cst_12 = arith.constant dense<0.000000e+00> : vector<2x128xf32>
      %33 = tpu.matmul %arg7, %3, %cst_12 {dimension_numbers = #tpu.dot_dimension_numbers<[1], [0], [0], [1], [0, 0, 1, 1], [], []>} : vector<2x32xf32>, vector<32x128xf32>, vector<2x128xf32> -> vector<2x128xf32>
      %34 = arith.addf %32, %33 : vector<2x128xf32>
      %35 = arith.negf %34 : vector<2x128xf32>
      %36 = math.exp %35 : vector<2x128xf32>
      %cst_13 = arith.constant 1.000000e+00 : f32
      %37 = vector.broadcast %cst_13 : f32 to vector<2x128xf32>
      %38 = arith.addf %37, %36 : vector<2x128xf32>
      %39 = arith.divf %37, %38 : vector<2x128xf32>
      %40 = math.tanh %34 : vector<2x128xf32>
      %41 = vector.extract_strided_slice %39 {offsets = [0, 0], sizes = [2, 32], strides = [1, 1]} : vector<2x128xf32> to vector<2x32xf32>
      %42 = vector.extract_strided_slice %39 {offsets = [0, 32], sizes = [2, 32], strides = [1, 1]} : vector<2x128xf32> to vector<2x32xf32>
      %43 = vector.extract_strided_slice %40 {offsets = [0, 64], sizes = [2, 32], strides = [1, 1]} : vector<2x128xf32> to vector<2x32xf32>
      %44 = vector.extract_strided_slice %39 {offsets = [0, 96], sizes = [2, 32], strides = [1, 1]} : vector<2x128xf32> to vector<2x32xf32>
      %45 = arith.mulf %42, %arg8 : vector<2x32xf32>
      %46 = arith.mulf %41, %43 : vector<2x32xf32>
      %47 = arith.addf %45, %46 : vector<2x32xf32>
      %48 = math.tanh %47 : vector<2x32xf32>
      %49 = arith.mulf %44, %48 : vector<2x32xf32>
      %50 = vector.extract_strided_slice %11 {offsets = [2, 0, 0], sizes = [1, 2, 128], strides = [1, 1, 1]} : vector<3x8x128xf32> to vector<1x2x128xf32>
      %51 = vector.shape_cast %50 : vector<1x2x128xf32> to vector<2x128xf32>
      %cst_14 = arith.constant dense<0.000000e+00> : vector<2x128xf32>
      %52 = tpu.matmul %arg9, %5, %cst_14 {dimension_numbers = #tpu.dot_dimension_numbers<[1], [0], [0], [1], [0, 0, 1, 1], [], []>} : vector<2x32xf32>, vector<32x128xf32>, vector<2x128xf32> -> vector<2x128xf32>
      %53 = arith.addf %51, %52 : vector<2x128xf32>
      %54 = arith.negf %53 : vector<2x128xf32>
      %55 = math.exp %54 : vector<2x128xf32>
      %cst_15 = arith.constant 1.000000e+00 : f32
      %56 = vector.broadcast %cst_15 : f32 to vector<2x128xf32>
      %57 = arith.addf %56, %55 : vector<2x128xf32>
      %58 = arith.divf %56, %57 : vector<2x128xf32>
      %59 = math.tanh %53 : vector<2x128xf32>
      %60 = vector.extract_strided_slice %58 {offsets = [0, 0], sizes = [2, 32], strides = [1, 1]} : vector<2x128xf32> to vector<2x32xf32>
      %61 = vector.extract_strided_slice %58 {offsets = [0, 32], sizes = [2, 32], strides = [1, 1]} : vector<2x128xf32> to vector<2x32xf32>
      %62 = vector.extract_strided_slice %59 {offsets = [0, 64], sizes = [2, 32], strides = [1, 1]} : vector<2x128xf32> to vector<2x32xf32>
      %63 = vector.extract_strided_slice %58 {offsets = [0, 96], sizes = [2, 32], strides = [1, 1]} : vector<2x128xf32> to vector<2x32xf32>
      %64 = arith.mulf %61, %arg10 : vector<2x32xf32>
      %65 = arith.mulf %60, %62 : vector<2x32xf32>
      %66 = arith.addf %64, %65 : vector<2x32xf32>
      %67 = math.tanh %66 : vector<2x32xf32>
      %68 = arith.mulf %63, %67 : vector<2x32xf32>
      %69 = vector.extract_strided_slice %11 {offsets = [0, 2, 0], sizes = [1, 2, 128], strides = [1, 1, 1]} : vector<3x8x128xf32> to vector<1x2x128xf32>
      %70 = vector.shape_cast %69 : vector<1x2x128xf32> to vector<2x128xf32>
      %cst_16 = arith.constant dense<0.000000e+00> : vector<2x128xf32>
      %71 = tpu.matmul %30, %1, %cst_16 {dimension_numbers = #tpu.dot_dimension_numbers<[1], [0], [0], [1], [0, 0, 1, 1], [], []>} : vector<2x32xf32>, vector<32x128xf32>, vector<2x128xf32> -> vector<2x128xf32>
      %72 = arith.addf %70, %71 : vector<2x128xf32>
      %73 = arith.negf %72 : vector<2x128xf32>
      %74 = math.exp %73 : vector<2x128xf32>
      %cst_17 = arith.constant 1.000000e+00 : f32
      %75 = vector.broadcast %cst_17 : f32 to vector<2x128xf32>
      %76 = arith.addf %75, %74 : vector<2x128xf32>
      %77 = arith.divf %75, %76 : vector<2x128xf32>
      %78 = math.tanh %72 : vector<2x128xf32>
      %79 = vector.extract_strided_slice %77 {offsets = [0, 0], sizes = [2, 32], strides = [1, 1]} : vector<2x128xf32> to vector<2x32xf32>
      %80 = vector.extract_strided_slice %77 {offsets = [0, 32], sizes = [2, 32], strides = [1, 1]} : vector<2x128xf32> to vector<2x32xf32>
      %81 = vector.extract_strided_slice %78 {offsets = [0, 64], sizes = [2, 32], strides = [1, 1]} : vector<2x128xf32> to vector<2x32xf32>
      %82 = vector.extract_strided_slice %77 {offsets = [0, 96], sizes = [2, 32], strides = [1, 1]} : vector<2x128xf32> to vector<2x32xf32>
      %83 = arith.mulf %80, %28 : vector<2x32xf32>
      %84 = arith.mulf %79, %81 : vector<2x32xf32>
      %85 = arith.addf %83, %84 : vector<2x32xf32>
      %86 = math.tanh %85 : vector<2x32xf32>
      %87 = arith.mulf %82, %86 : vector<2x32xf32>
      %88 = vector.extract_strided_slice %11 {offsets = [1, 2, 0], sizes = [1, 2, 128], strides = [1, 1, 1]} : vector<3x8x128xf32> to vector<1x2x128xf32>
      %89 = vector.shape_cast %88 : vector<1x2x128xf32> to vector<2x128xf32>
      %cst_18 = arith.constant dense<0.000000e+00> : vector<2x128xf32>
      %90 = tpu.matmul %49, %3, %cst_18 {dimension_numbers = #tpu.dot_dimension_numbers<[1], [0], [0], [1], [0, 0, 1, 1], [], []>} : vector<2x32xf32>, vector<32x128xf32>, vector<2x128xf32> -> vector<2x128xf32>
      %91 = arith.addf %89, %90 : vector<2x128xf32>
      %92 = arith.negf %91 : vector<2x128xf32>
      %93 = math.exp %92 : vector<2x128xf32>
      %cst_19 = arith.constant 1.000000e+00 : f32
      %94 = vector.broadcast %cst_19 : f32 to vector<2x128xf32>
      %95 = arith.addf %94, %93 : vector<2x128xf32>
      %96 = arith.divf %94, %95 : vector<2x128xf32>
      %97 = math.tanh %91 : vector<2x128xf32>
      %98 = vector.extract_strided_slice %96 {offsets = [0, 0], sizes = [2, 32], strides = [1, 1]} : vector<2x128xf32> to vector<2x32xf32>
      %99 = vector.extract_strided_slice %96 {offsets = [0, 32], sizes = [2, 32], strides = [1, 1]} : vector<2x128xf32> to vector<2x32xf32>
      %100 = vector.extract_strided_slice %97 {offsets = [0, 64], sizes = [2, 32], strides = [1, 1]} : vector<2x128xf32> to vector<2x32xf32>
      %101 = vector.extract_strided_slice %96 {offsets = [0, 96], sizes = [2, 32], strides = [1, 1]} : vector<2x128xf32> to vector<2x32xf32>
      %102 = arith.mulf %99, %47 : vector<2x32xf32>
      %103 = arith.mulf %98, %100 : vector<2x32xf32>
      %104 = arith.addf %102, %103 : vector<2x32xf32>
      %105 = math.tanh %104 : vector<2x32xf32>
      %106 = arith.mulf %101, %105 : vector<2x32xf32>
      %107 = vector.extract_strided_slice %11 {offsets = [2, 2, 0], sizes = [1, 2, 128], strides = [1, 1, 1]} : vector<3x8x128xf32> to vector<1x2x128xf32>
      %108 = vector.shape_cast %107 : vector<1x2x128xf32> to vector<2x128xf32>
      %cst_20 = arith.constant dense<0.000000e+00> : vector<2x128xf32>
      %109 = tpu.matmul %68, %5, %cst_20 {dimension_numbers = #tpu.dot_dimension_numbers<[1], [0], [0], [1], [0, 0, 1, 1], [], []>} : vector<2x32xf32>, vector<32x128xf32>, vector<2x128xf32> -> vector<2x128xf32>
      %110 = arith.addf %108, %109 : vector<2x128xf32>
      %111 = arith.negf %110 : vector<2x128xf32>
      %112 = math.exp %111 : vector<2x128xf32>
      %cst_21 = arith.constant 1.000000e+00 : f32
      %113 = vector.broadcast %cst_21 : f32 to vector<2x128xf32>
      %114 = arith.addf %113, %112 : vector<2x128xf32>
      %115 = arith.divf %113, %114 : vector<2x128xf32>
      %116 = math.tanh %110 : vector<2x128xf32>
      %117 = vector.extract_strided_slice %115 {offsets = [0, 0], sizes = [2, 32], strides = [1, 1]} : vector<2x128xf32> to vector<2x32xf32>
      %118 = vector.extract_strided_slice %115 {offsets = [0, 32], sizes = [2, 32], strides = [1, 1]} : vector<2x128xf32> to vector<2x32xf32>
      %119 = vector.extract_strided_slice %116 {offsets = [0, 64], sizes = [2, 32], strides = [1, 1]} : vector<2x128xf32> to vector<2x32xf32>
      %120 = vector.extract_strided_slice %115 {offsets = [0, 96], sizes = [2, 32], strides = [1, 1]} : vector<2x128xf32> to vector<2x32xf32>
      %121 = arith.mulf %118, %66 : vector<2x32xf32>
      %122 = arith.mulf %117, %119 : vector<2x32xf32>
      %123 = arith.addf %121, %122 : vector<2x32xf32>
      %124 = math.tanh %123 : vector<2x32xf32>
      %125 = arith.mulf %120, %124 : vector<2x32xf32>
      %126 = vector.extract_strided_slice %11 {offsets = [0, 4, 0], sizes = [1, 2, 128], strides = [1, 1, 1]} : vector<3x8x128xf32> to vector<1x2x128xf32>
      %127 = vector.shape_cast %126 : vector<1x2x128xf32> to vector<2x128xf32>
      %cst_22 = arith.constant dense<0.000000e+00> : vector<2x128xf32>
      %128 = tpu.matmul %87, %1, %cst_22 {dimension_numbers = #tpu.dot_dimension_numbers<[1], [0], [0], [1], [0, 0, 1, 1], [], []>} : vector<2x32xf32>, vector<32x128xf32>, vector<2x128xf32> -> vector<2x128xf32>
      %129 = arith.addf %127, %128 : vector<2x128xf32>
      %130 = arith.negf %129 : vector<2x128xf32>
      %131 = math.exp %130 : vector<2x128xf32>
      %cst_23 = arith.constant 1.000000e+00 : f32
      %132 = vector.broadcast %cst_23 : f32 to vector<2x128xf32>
      %133 = arith.addf %132, %131 : vector<2x128xf32>
      %134 = arith.divf %132, %133 : vector<2x128xf32>
      %135 = math.tanh %129 : vector<2x128xf32>
      %136 = vector.extract_strided_slice %134 {offsets = [0, 0], sizes = [2, 32], strides = [1, 1]} : vector<2x128xf32> to vector<2x32xf32>
      %137 = vector.extract_strided_slice %134 {offsets = [0, 32], sizes = [2, 32], strides = [1, 1]} : vector<2x128xf32> to vector<2x32xf32>
      %138 = vector.extract_strided_slice %135 {offsets = [0, 64], sizes = [2, 32], strides = [1, 1]} : vector<2x128xf32> to vector<2x32xf32>
      %139 = vector.extract_strided_slice %134 {offsets = [0, 96], sizes = [2, 32], strides = [1, 1]} : vector<2x128xf32> to vector<2x32xf32>
      %140 = arith.mulf %137, %85 : vector<2x32xf32>
      %141 = arith.mulf %136, %138 : vector<2x32xf32>
      %142 = arith.addf %140, %141 : vector<2x32xf32>
      %143 = math.tanh %142 : vector<2x32xf32>
      %144 = arith.mulf %139, %143 : vector<2x32xf32>
      %145 = vector.extract_strided_slice %11 {offsets = [1, 4, 0], sizes = [1, 2, 128], strides = [1, 1, 1]} : vector<3x8x128xf32> to vector<1x2x128xf32>
      %146 = vector.shape_cast %145 : vector<1x2x128xf32> to vector<2x128xf32>
      %cst_24 = arith.constant dense<0.000000e+00> : vector<2x128xf32>
      %147 = tpu.matmul %106, %3, %cst_24 {dimension_numbers = #tpu.dot_dimension_numbers<[1], [0], [0], [1], [0, 0, 1, 1], [], []>} : vector<2x32xf32>, vector<32x128xf32>, vector<2x128xf32> -> vector<2x128xf32>
      %148 = arith.addf %146, %147 : vector<2x128xf32>
      %149 = arith.negf %148 : vector<2x128xf32>
      %150 = math.exp %149 : vector<2x128xf32>
      %cst_25 = arith.constant 1.000000e+00 : f32
      %151 = vector.broadcast %cst_25 : f32 to vector<2x128xf32>
      %152 = arith.addf %151, %150 : vector<2x128xf32>
      %153 = arith.divf %151, %152 : vector<2x128xf32>
      %154 = math.tanh %148 : vector<2x128xf32>
      %155 = vector.extract_strided_slice %153 {offsets = [0, 0], sizes = [2, 32], strides = [1, 1]} : vector<2x128xf32> to vector<2x32xf32>
      %156 = vector.extract_strided_slice %153 {offsets = [0, 32], sizes = [2, 32], strides = [1, 1]} : vector<2x128xf32> to vector<2x32xf32>
      %157 = vector.extract_strided_slice %154 {offsets = [0, 64], sizes = [2, 32], strides = [1, 1]} : vector<2x128xf32> to vector<2x32xf32>
      %158 = vector.extract_strided_slice %153 {offsets = [0, 96], sizes = [2, 32], strides = [1, 1]} : vector<2x128xf32> to vector<2x32xf32>
      %159 = arith.mulf %156, %104 : vector<2x32xf32>
      %160 = arith.mulf %155, %157 : vector<2x32xf32>
      %161 = arith.addf %159, %160 : vector<2x32xf32>
      %162 = math.tanh %161 : vector<2x32xf32>
      %163 = arith.mulf %158, %162 : vector<2x32xf32>
      %164 = vector.extract_strided_slice %11 {offsets = [2, 4, 0], sizes = [1, 2, 128], strides = [1, 1, 1]} : vector<3x8x128xf32> to vector<1x2x128xf32>
      %165 = vector.shape_cast %164 : vector<1x2x128xf32> to vector<2x128xf32>
      %cst_26 = arith.constant dense<0.000000e+00> : vector<2x128xf32>
      %166 = tpu.matmul %125, %5, %cst_26 {dimension_numbers = #tpu.dot_dimension_numbers<[1], [0], [0], [1], [0, 0, 1, 1], [], []>} : vector<2x32xf32>, vector<32x128xf32>, vector<2x128xf32> -> vector<2x128xf32>
      %167 = arith.addf %165, %166 : vector<2x128xf32>
      %168 = arith.negf %167 : vector<2x128xf32>
      %169 = math.exp %168 : vector<2x128xf32>
      %cst_27 = arith.constant 1.000000e+00 : f32
      %170 = vector.broadcast %cst_27 : f32 to vector<2x128xf32>
      %171 = arith.addf %170, %169 : vector<2x128xf32>
      %172 = arith.divf %170, %171 : vector<2x128xf32>
      %173 = math.tanh %167 : vector<2x128xf32>
      %174 = vector.extract_strided_slice %172 {offsets = [0, 0], sizes = [2, 32], strides = [1, 1]} : vector<2x128xf32> to vector<2x32xf32>
      %175 = vector.extract_strided_slice %172 {offsets = [0, 32], sizes = [2, 32], strides = [1, 1]} : vector<2x128xf32> to vector<2x32xf32>
      %176 = vector.extract_strided_slice %173 {offsets = [0, 64], sizes = [2, 32], strides = [1, 1]} : vector<2x128xf32> to vector<2x32xf32>
      %177 = vector.extract_strided_slice %172 {offsets = [0, 96], sizes = [2, 32], strides = [1, 1]} : vector<2x128xf32> to vector<2x32xf32>
      %178 = arith.mulf %175, %123 : vector<2x32xf32>
      %179 = arith.mulf %174, %176 : vector<2x32xf32>
      %180 = arith.addf %178, %179 : vector<2x32xf32>
      %181 = math.tanh %180 : vector<2x32xf32>
      %182 = arith.mulf %177, %181 : vector<2x32xf32>
      %183 = vector.extract_strided_slice %11 {offsets = [0, 6, 0], sizes = [1, 2, 128], strides = [1, 1, 1]} : vector<3x8x128xf32> to vector<1x2x128xf32>
      %184 = vector.shape_cast %183 : vector<1x2x128xf32> to vector<2x128xf32>
      %cst_28 = arith.constant dense<0.000000e+00> : vector<2x128xf32>
      %185 = tpu.matmul %144, %1, %cst_28 {dimension_numbers = #tpu.dot_dimension_numbers<[1], [0], [0], [1], [0, 0, 1, 1], [], []>} : vector<2x32xf32>, vector<32x128xf32>, vector<2x128xf32> -> vector<2x128xf32>
      %186 = arith.addf %184, %185 : vector<2x128xf32>
      %187 = arith.negf %186 : vector<2x128xf32>
      %188 = math.exp %187 : vector<2x128xf32>
      %cst_29 = arith.constant 1.000000e+00 : f32
      %189 = vector.broadcast %cst_29 : f32 to vector<2x128xf32>
      %190 = arith.addf %189, %188 : vector<2x128xf32>
      %191 = arith.divf %189, %190 : vector<2x128xf32>
      %192 = math.tanh %186 : vector<2x128xf32>
      %193 = vector.extract_strided_slice %191 {offsets = [0, 0], sizes = [2, 32], strides = [1, 1]} : vector<2x128xf32> to vector<2x32xf32>
      %194 = vector.extract_strided_slice %191 {offsets = [0, 32], sizes = [2, 32], strides = [1, 1]} : vector<2x128xf32> to vector<2x32xf32>
      %195 = vector.extract_strided_slice %192 {offsets = [0, 64], sizes = [2, 32], strides = [1, 1]} : vector<2x128xf32> to vector<2x32xf32>
      %196 = vector.extract_strided_slice %191 {offsets = [0, 96], sizes = [2, 32], strides = [1, 1]} : vector<2x128xf32> to vector<2x32xf32>
      %197 = arith.mulf %194, %142 : vector<2x32xf32>
      %198 = arith.mulf %193, %195 : vector<2x32xf32>
      %199 = arith.addf %197, %198 : vector<2x32xf32>
      %200 = math.tanh %199 : vector<2x32xf32>
      %201 = arith.mulf %196, %200 : vector<2x32xf32>
      %202 = vector.extract_strided_slice %11 {offsets = [1, 6, 0], sizes = [1, 2, 128], strides = [1, 1, 1]} : vector<3x8x128xf32> to vector<1x2x128xf32>
      %203 = vector.shape_cast %202 : vector<1x2x128xf32> to vector<2x128xf32>
      %cst_30 = arith.constant dense<0.000000e+00> : vector<2x128xf32>
      %204 = tpu.matmul %163, %3, %cst_30 {dimension_numbers = #tpu.dot_dimension_numbers<[1], [0], [0], [1], [0, 0, 1, 1], [], []>} : vector<2x32xf32>, vector<32x128xf32>, vector<2x128xf32> -> vector<2x128xf32>
      %205 = arith.addf %203, %204 : vector<2x128xf32>
      %206 = arith.negf %205 : vector<2x128xf32>
      %207 = math.exp %206 : vector<2x128xf32>
      %cst_31 = arith.constant 1.000000e+00 : f32
      %208 = vector.broadcast %cst_31 : f32 to vector<2x128xf32>
      %209 = arith.addf %208, %207 : vector<2x128xf32>
      %210 = arith.divf %208, %209 : vector<2x128xf32>
      %211 = math.tanh %205 : vector<2x128xf32>
      %212 = vector.extract_strided_slice %210 {offsets = [0, 0], sizes = [2, 32], strides = [1, 1]} : vector<2x128xf32> to vector<2x32xf32>
      %213 = vector.extract_strided_slice %210 {offsets = [0, 32], sizes = [2, 32], strides = [1, 1]} : vector<2x128xf32> to vector<2x32xf32>
      %214 = vector.extract_strided_slice %211 {offsets = [0, 64], sizes = [2, 32], strides = [1, 1]} : vector<2x128xf32> to vector<2x32xf32>
      %215 = vector.extract_strided_slice %210 {offsets = [0, 96], sizes = [2, 32], strides = [1, 1]} : vector<2x128xf32> to vector<2x32xf32>
      %216 = arith.mulf %213, %161 : vector<2x32xf32>
      %217 = arith.mulf %212, %214 : vector<2x32xf32>
      %218 = arith.addf %216, %217 : vector<2x32xf32>
      %219 = math.tanh %218 : vector<2x32xf32>
      %220 = arith.mulf %215, %219 : vector<2x32xf32>
      %221 = vector.extract_strided_slice %11 {offsets = [2, 6, 0], sizes = [1, 2, 128], strides = [1, 1, 1]} : vector<3x8x128xf32> to vector<1x2x128xf32>
      %222 = vector.shape_cast %221 : vector<1x2x128xf32> to vector<2x128xf32>
      %cst_32 = arith.constant dense<0.000000e+00> : vector<2x128xf32>
      %223 = tpu.matmul %182, %5, %cst_32 {dimension_numbers = #tpu.dot_dimension_numbers<[1], [0], [0], [1], [0, 0, 1, 1], [], []>} : vector<2x32xf32>, vector<32x128xf32>, vector<2x128xf32> -> vector<2x128xf32>
      %224 = arith.addf %222, %223 : vector<2x128xf32>
      %225 = arith.negf %224 : vector<2x128xf32>
      %226 = math.exp %225 : vector<2x128xf32>
      %cst_33 = arith.constant 1.000000e+00 : f32
      %227 = vector.broadcast %cst_33 : f32 to vector<2x128xf32>
      %228 = arith.addf %227, %226 : vector<2x128xf32>
      %229 = arith.divf %227, %228 : vector<2x128xf32>
      %230 = math.tanh %224 : vector<2x128xf32>
      %231 = vector.extract_strided_slice %229 {offsets = [0, 0], sizes = [2, 32], strides = [1, 1]} : vector<2x128xf32> to vector<2x32xf32>
      %232 = vector.extract_strided_slice %229 {offsets = [0, 32], sizes = [2, 32], strides = [1, 1]} : vector<2x128xf32> to vector<2x32xf32>
      %233 = vector.extract_strided_slice %230 {offsets = [0, 64], sizes = [2, 32], strides = [1, 1]} : vector<2x128xf32> to vector<2x32xf32>
      %234 = vector.extract_strided_slice %229 {offsets = [0, 96], sizes = [2, 32], strides = [1, 1]} : vector<2x128xf32> to vector<2x32xf32>
      %235 = arith.mulf %232, %180 : vector<2x32xf32>
      %236 = arith.mulf %231, %233 : vector<2x32xf32>
      %237 = arith.addf %235, %236 : vector<2x32xf32>
      %238 = math.tanh %237 : vector<2x32xf32>
      %239 = arith.mulf %234, %238 : vector<2x32xf32>
      %240 = tpu.concatenate %30, %87, %144, %201 in 1 : vector<2x32xf32>, vector<2x32xf32>, vector<2x32xf32>, vector<2x32xf32> -> vector<2x128xf32>
      %241 = tpu.concatenate %49, %106, %163, %220 in 1 : vector<2x32xf32>, vector<2x32xf32>, vector<2x32xf32>, vector<2x32xf32> -> vector<2x128xf32>
      %242 = tpu.concatenate %68, %125, %182, %239 in 1 : vector<2x32xf32>, vector<2x32xf32>, vector<2x32xf32>, vector<2x32xf32> -> vector<2x128xf32>
      %243 = vector.shape_cast %240 : vector<2x128xf32> to vector<1x2x128xf32>
      %244 = vector.shape_cast %241 : vector<2x128xf32> to vector<1x2x128xf32>
      %245 = vector.shape_cast %242 : vector<2x128xf32> to vector<1x2x128xf32>
      %246 = tpu.concatenate %243, %244, %245 in 0 : vector<1x2x128xf32>, vector<1x2x128xf32>, vector<1x2x128xf32> -> vector<3x2x128xf32>
      %247 = arith.index_cast %arg4 : i32 to index
      %c0_34 = arith.constant 0 : index
      %c0_35 = arith.constant 0 : index
      %c0_36 = arith.constant 0 : index
      %248 = vector.load %arg3[%247, %c0_34, %c0_35, %c0_36] : memref<16x3x2x128xf32, #tpu.memory_space<vmem>>, vector<1x3x2x128xf32>
      %249 = vector.shape_cast %248 : vector<1x3x2x128xf32> to vector<3x2x128xf32>
      %250 = vector.shape_cast %246 : vector<3x2x128xf32> to vector<1x3x2x128xf32>
      tpu.vector_store %arg3[%247, %c0_34, %c0_35, %c0_36], %250 {strides = array<i32>} : memref<16x3x2x128xf32, #tpu.memory_space<vmem>>, vector<1x3x2x128xf32>,
      scf.yield %201, %199, %220, %218, %239, %237 : vector<2x32xf32>, vector<2x32xf32>, vector<2x32xf32>, vector<2x32xf32>, vector<2x32xf32>, vector<2x32xf32>
    }
    %c16_i32_6 = arith.constant 16 : i32
    return
  }
  func.func @transform_0(%arg0: i32) -> (i32, i32, i32, i32) {
    %c0_i32 = arith.constant 0 : i32
    %c0_i32_0 = arith.constant 0 : i32
    %c0_i32_1 = arith.constant 0 : i32
    %c0_i32_2 = arith.constant 0 : i32
    %c0_i32_3 = arith.constant 0 : i32
    return %c0_i32, %c0_i32_0, %c0_i32_1, %c0_i32_2 : i32, i32, i32, i32
  }
  func.func @transform_1(%arg0: i32) -> (i32, i32, i32) {
    %c0_i32 = arith.constant 0 : i32
    %c0_i32_0 = arith.constant 0 : i32
    %c0_i32_1 = arith.constant 0 : i32
    %c0_i32_2 = arith.constant 0 : i32
    return %c0_i32, %c0_i32_0, %c0_i32_1 : i32, i32, i32
  }
  func.func @transform_2(%arg0: i32) -> (i32, i32, i32, i32) {
    %c0_i32 = arith.constant 0 : i32
    %c0_i32_0 = arith.constant 0 : i32
    %c0_i32_1 = arith.constant 0 : i32
    %c0_i32_2 = arith.constant 0 : i32
    %c0_i32_3 = arith.constant 0 : i32
    return %c0_i32, %c0_i32_0, %c0_i32_1, %c0_i32_2 : i32, i32, i32, i32
  }
}

</mosaic_0001>

<llo_original>
// kernel: tpu_custom_call.1
$region0: #{tpu_custom_call.1}
  #allocation0 [shape = 'u32[]', space=smem, size = 0x4, offset = 0x4, fixed_abs, tag = 'smem constant byte address 0x4 - core index']
  #allocation1 [shape = 'u32[144,128]{1,0:T(1,128)}', space=vmem, size = 0x12000, scoped, tag = 'internal scratch']
  %s0 = inlined_call_operand.hbm [shape: f32[16,3,8,128], index: 0, kind: input, shape index: {}]
  %s1 = inlined_call_operand.hbm [shape: f32[3,32,128], index: 1, kind: input, shape index: {}]
  %s2 = inlined_call_operand.hbm [shape: f32[16,3,2,128], index: 2, kind: output, shape index: {}]
  %s3 = sld [smem:[#allocation0]]
  $region33: #{tpu_custom_call.1} parent=0
    _
  %s5 = ssub.s32 1, %s3
  %s6 = scalar_select 0, %s5, %s3
  $region1: #{tpu_custom_call.1} parent=0
    #allocation2 [shape = 'u8[196608]{0}', space=vmem, size = 0x30000, scoped, tag = 'input window, operand 0, single buffered']
    #allocation3 [shape = 's32[1]{0}', space=sflag, size = 0x4, scoped, tag = 'scoped memory for tpu_custom_call.1']
    #allocation4 [shape = 's32[1]{0}', space=sflag, size = 0x4, scoped, tag = 'scoped memory for tpu_custom_call.1']
    #allocation5 [shape = 'u8[49152]{0}', space=vmem, size = 0xc000, scoped, tag = 'input window, operand 1, single buffered']
    #allocation6 [shape = 's32[1]{0}', space=sflag, size = 0x4, scoped, tag = 'scoped memory for tpu_custom_call.1']
    #allocation7 [shape = 'u8[49152]{0}', space=vmem, size = 0xc000, scoped, tag = 'output window, operand 0, single buffered']
    %7 = vsyncpa [#allocation3], 0
    %8 = vsyncpa [#allocation6], 0
    %9 = vsyncpa [#allocation4], 0
    // Predicated region
    $region2: #{tpu_custom_call.1} parent=1 // pred_check
      _
    $region3: #{tpu_custom_call.1} parent=1 // pred_check_branch
      %11 = sbr.rel (0) target = $region5
    $region4: #{tpu_custom_call.1} parent=1 // pred_region
      %s13 = ssub.s32 6144, 6144
      %14 = vsyncadd [#allocation3], %s13
      %s15 = sshll.u32 [#allocation2], 4
      %s16 = int_to_ptr.vmem [resolvable:$true] %s15
      %21 = dma.hbm_to_vmem [thread:$0]  %s0, 6144, %s16, [#allocation3], 128, 128, 8
    $region5: #{tpu_custom_call.1} parent=1 // pred_fallthru
      _
    // Predicated region
    $region6: #{tpu_custom_call.1} parent=1 // pred_check
      _
    $region7: #{tpu_custom_call.1} parent=1 // pred_check_branch
      %23 = sbr.rel (0) target = $region9
    $region8: #{tpu_custom_call.1} parent=1 // pred_region
      %s25 = ssub.s32 1536, 1536
      %26 = vsyncadd [#allocation6], %s25
      %s27 = sshll.u32 [#allocation5], 4
      %s28 = int_to_ptr.vmem [resolvable:$true] %s27
      %33 = dma.hbm_to_vmem [thread:$0]  %s1, 1536, %s28, [#allocation6], 128, 128, 8
    $region9: #{tpu_custom_call.1} parent=1 // pred_fallthru
      _
    // Predicated region
    $region10: #{tpu_custom_call.1} parent=1 // pred_check
      _
    $region11: #{tpu_custom_call.1} parent=1 // pred_check_branch
      %35 = sbr.rel (0) target = $region13
    $region12: #{tpu_custom_call.1} parent=1 // pred_region
      %36 = dma.done [#allocation3], 6144
    $region13: #{tpu_custom_call.1} parent=1 // pred_fallthru
      _
    // Predicated region
    $region14: #{tpu_custom_call.1} parent=1 // pred_check
      _
    $region15: #{tpu_custom_call.1} parent=1 // pred_check_branch
      %38 = sbr.rel (0) target = $region17
    $region16: #{tpu_custom_call.1} parent=1 // pred_region
      %39 = dma.done [#allocation6], 1536
    $region17: #{tpu_custom_call.1} parent=1 // pred_fallthru
      _
    %v40 = vld [vmem:[#allocation5] sm:$0xff]
    %v41 = vld [vmem:[#allocation5 + $0x8] sm:$0xff]
    %v42 = vld [vmem:[#allocation5 + $0x10] sm:$0xff]
    %v43 = vld [vmem:[#allocation5 + $0x18] sm:$0xff]
    %s44 = scalar_lea.vmem [#allocation5], 32
    %v45 = vld [vmem:[%s44] sm:$0xff]
    %v46 = vld [vmem:[%s44 + $0x8] sm:$0xff]
    %v47 = vld [vmem:[%s44 + $0x10] sm:$0xff]
    %v48 = vld [vmem:[%s44 + $0x18] sm:$0xff]
    %s49 = scalar_lea.vmem [#allocation5], 64
    %v50 = vld [vmem:[%s49] sm:$0xff]
    %v51 = vld [vmem:[%s49 + $0x8] sm:$0xff]
    %v52 = vld [vmem:[%s49 + $0x10] sm:$0xff]
    %v53 = vld [vmem:[%s49 + $0x18] sm:$0xff]
    loop: start=0, step=1, limit=16
    $region18: #{tpu_custom_call.1} parent=1 // loop_pre_header
      _
    $region19: #{tpu_custom_call.1} parent=1 // loop_header
      %s55 = sphi 0, %s59
      %p56 = scmp.ge.s32.totalorder %s55, 16
      %v60 = vphi 0.0, %v1129
      %v61 = vphi 0.0, %v1123
      %v62 = vphi 0.0, %v1236
      %v63 = vphi 0.0, %v1230
      %v64 = vphi 0.0, %v1343
      %v65 = vphi 0.0, %v1337
    $region20: #{tpu_custom_call.1} parent=1 // loop_header_branch
      %58 = sbr.rel (%p56) target = $region24
    $region21: #{tpu_custom_call.1} parent=1 // loop_body
      %s66 = smul.u32 %s55, 24
      %s67 = scalar_lea.vmem [#allocation2], %s66
      %v68 = vld [vmem:[%s67] sm:$0xff]
      %v69 = vld [vmem:[%s67 + $0x8] sm:$0xff]
      %v70 = vld [vmem:[%s67 + $0x10] sm:$0xff]
      %v72 = vrot.slane %v60, 6
      %73 = vrot.lane.b32.xlu0 %v72, 32
      %v74 = vpop.permute.xlu0 %73
      %vm75 = vcmask 261120
      %v76 = vsel %vm75, %v74, 0
      %78 = vmatprep.subr.mxu0 0.0
      %79 = vmatpush1.msra.mxu0 %v40
      %80 = vmatprep.subr.mxu0 0.0
      %81 = vmatpush1.msra.mxu0 %v41
      %82 = vmatprep.subr.mxu0 0.0
      %83 = vmatpush1.msra.mxu0 %v42
      %84 = vmatprep.subr.mxu0 0.0
      %85 = vmatpush1.msra.mxu0 %v43
      %86 = vmatprep.subr.mxu0 0.0
      %87 = vmatpush1.msra.mxu0 0.0
      %88 = vmatprep.subr.mxu0 0.0
      %89 = vmatpush1.msra.mxu0 0.0
      %90 = vmatprep.subr.mxu0 0.0
      %91 = vmatpush1.msra.mxu0 0.0
      %92 = vmatprep.subr.mxu0 0.0
      %93 = vmatpush1.msra.mxu0 0.0
      %94 = vmatprep.subr.mxu0 0.0
      %95 = vmatpush1.msra.mxu0 0.0
      %96 = vmatprep.subr.mxu0 0.0
      %97 = vmatpush1.msra.mxu0 0.0
      %98 = vmatprep.subr.mxu0 0.0
      %99 = vmatpush1.msra.mxu0 0.0
      %100 = vmatprep.subr.mxu0 0.0
      %101 = vmatpush1.msra.mxu0 0.0
      %102 = vmatprep.subr.mxu0 0.0
      %103 = vmatpush1.msra.mxu0 0.0
      %104 = vmatprep.subr.mxu0 0.0
      %105 = vmatpush1.msra.mxu0 0.0
      %106 = vmatprep.subr.mxu0 0.0
      %107 = vmatpush1.msra.mxu0 0.0
      %108 = vmatprep.subr.mxu0 0.0
      %109 = vmatpush1.msra.mxu0 0.0
      %110 = vmatprep.subr.mxu0 0.0
      %111 = vmatpush1.msra.mxu0 0.0
      %112 = vmatprep.subr.mxu0 0.0
      %113 = vmatpush1.msra.mxu0 0.0
      %114 = vmatprep.subr.mxu0 0.0
      %115 = vmatpush1.msra.mxu0 0.0
      %116 = vmatprep.subr.mxu0 0.0
      %117 = vmatpush1.msra.mxu0 0.0
      %118 = vmatprep.subr.mxu0 0.0
      %119 = vmatpush1.msra.mxu0 0.0
      %120 = vmatprep.subr.mxu0 0.0
      %121 = vmatpush1.msra.mxu0 0.0
      %122 = vmatprep.subr.mxu0 0.0
      %123 = vmatpush1.msra.mxu0 0.0
      %124 = vmatprep.subr.mxu0 0.0
      %125 = vmatpush1.msra.mxu0 0.0
      %126 = vmatprep.subr.mxu0 0.0
      %127 = vmatpush1.msra.mxu0 0.0
      %128 = vmatprep.subr.mxu0 0.0
      %129 = vmatpush1.msra.mxu0 0.0
      %130 = vmatprep.subr.mxu0 0.0
      %131 = vmatpush1.msra.mxu0 0.0
      %132 = vmatprep.subr.mxu0 0.0
      %133 = vmatpush1.msra.mxu0 0.0
      %134 = vmatprep.subr.mxu0 0.0
      %135 = vmatpush1.msra.mxu0 0.0
      %136 = vmatprep.subr.mxu0 0.0
      %137 = vmatpush1.msra.mxu0 0.0
      %138 = vmatprep.subr.mxu0 0.0
      %139 = vmatpush1.msra.mxu0 0.0
      %140 = vmatprep.subr.mxu0 0.0
      %141 = vmatpush1.msra.mxu0 0.0
      %142 = vmatprep.mubr.f32.mxu0 0.0
      %143 = vmatmul.mubr.f32.gmra.mrb[0].mxu0 %v76
      %v144 = vpop.f32.mrb[0].mxu0
      %v145 = vadd.f32 0.0, %v144
      %v146 = vpop.f32.mrb[0].mxu0
      %147 = vdwg.mxu0
      %v148 = vadd.f32 %v68, %v145
      %v149 = vxor.u32 %v148, 2147483648
      %v150 = vmul.f32 %v149, 1.442695
      %v151 = vpow.pop %v150
      %v152 = vadd.f32 %v151, 1.0
      %v153 = vrcp.pop %v152
      %v154 = vmul.f32 1.0, %v153
      %v155 = vtanh.pop %v148
      %v157 = vrot.slane %v61, 6
      %v159 = vmul.f32 %v154, %v157
      %161 = vrot.lane.b32.xlu0 %v155, 64
      %v162 = vpop.permute.xlu0 %161
      %v164 = vmul.f32 %v154, %v162
      %166 = vrot.lane.b32.xlu0 %v164, 32
      %v167 = vpop.permute.xlu0 %166
      %v169 = vadd.f32 %v159, %v167
      %v170 = vtanh.pop %v169
      %172 = vrot.lane.b32.xlu0 %v170, 64
      %v173 = vpop.permute.xlu0 %172
      %v175 = vmul.f32 %v154, %v173
      %v177 = vrot.slane %v62, 6
      %178 = vrot.lane.b32.xlu0 %v177, 32
      %v179 = vpop.permute.xlu0 %178
      %v180 = vsel %vm75, %v179, 0
      %182 = vmatprep.subr.mxu0 0.0
      %183 = vmatpush1.msra.mxu0 %v45
      %184 = vmatprep.subr.mxu0 0.0
      %185 = vmatpush1.msra.mxu0 %v46
      %186 = vmatprep.subr.mxu0 0.0
      %187 = vmatpush1.msra.mxu0 %v47
      %188 = vmatprep.subr.mxu0 0.0
      %189 = vmatpush1.msra.mxu0 %v48
      %190 = vmatprep.subr.mxu0 0.0
      %191 = vmatpush1.msra.mxu0 0.0
      %192 = vmatprep.subr.mxu0 0.0
      %193 = vmatpush1.msra.mxu0 0.0
      %194 = vmatprep.subr.mxu0 0.0
      %195 = vmatpush1.msra.mxu0 0.0
      %196 = vmatprep.subr.mxu0 0.0
      %197 = vmatpush1.msra.mxu0 0.0
      %198 = vmatprep.subr.mxu0 0.0
      %199 = vmatpush1.msra.mxu0 0.0
      %200 = vmatprep.subr.mxu0 0.0
      %201 = vmatpush1.msra.mxu0 0.0
      %202 = vmatprep.subr.mxu0 0.0
      %203 = vmatpush1.msra.mxu0 0.0
      %204 = vmatprep.subr.mxu0 0.0
      %205 = vmatpush1.msra.mxu0 0.0
      %206 = vmatprep.subr.mxu0 0.0
      %207 = vmatpush1.msra.mxu0 0.0
      %208 = vmatprep.subr.mxu0 0.0
      %209 = vmatpush1.msra.mxu0 0.0
      %210 = vmatprep.subr.mxu0 0.0
      %211 = vmatpush1.msra.mxu0 0.0
      %212 = vmatprep.subr.mxu0 0.0
      %213 = vmatpush1.msra.mxu0 0.0
      %214 = vmatprep.subr.mxu0 0.0
      %215 = vmatpush1.msra.mxu0 0.0
      %216 = vmatprep.subr.mxu0 0.0
      %217 = vmatpush1.msra.mxu0 0.0
      %218 = vmatprep.subr.mxu0 0.0
      %219 = vmatpush1.msra.mxu0 0.0
      %220 = vmatprep.subr.mxu0 0.0
      %221 = vmatpush1.msra.mxu0 0.0
      %222 = vmatprep.subr.mxu0 0.0
      %223 = vmatpush1.msra.mxu0 0.0
      %224 = vmatprep.subr.mxu0 0.0
      %225 = vmatpush1.msra.mxu0 0.0
      %226 = vmatprep.subr.mxu0 0.0
      %227 = vmatpush1.msra.mxu0 0.0
      %228 = vmatprep.subr.mxu0 0.0
      %229 = vmatpush1.msra.mxu0 0.0
      %230 = vmatprep.subr.mxu0 0.0
      %231 = vmatpush1.msra.mxu0 0.0
      %232 = vmatprep.subr.mxu0 0.0
      %233 = vmatpush1.msra.mxu0 0.0
      %234 = vmatprep.subr.mxu0 0.0
      %235 = vmatpush1.msra.mxu0 0.0
      %236 = vmatprep.subr.mxu0 0.0
      %237 = vmatpush1.msra.mxu0 0.0
      %238 = vmatprep.subr.mxu0 0.0
      %239 = vmatpush1.msra.mxu0 0.0
      %240 = vmatprep.subr.mxu0 0.0
      %241 = vmatpush1.msra.mxu0 0.0
      %242 = vmatprep.subr.mxu0 0.0
      %243 = vmatpush1.msra.mxu0 0.0
      %244 = vmatprep.subr.mxu0 0.0
      %245 = vmatpush1.msra.mxu0 0.0
      %246 = vmatprep.mubr.f32.mxu0 0.0
      %247 = vmatmul.mubr.f32.gmra.mrb[0].mxu0 %v180
      %v248 = vpop.f32.mrb[0].mxu0
      %v249 = vadd.f32 0.0, %v248
      %v250 = vpop.f32.mrb[0].mxu0
      %251 = vdwg.mxu0
      %v252 = vadd.f32 %v69, %v249
      %v253 = vxor.u32 %v252, 2147483648
      %v254 = vmul.f32 %v253, 1.442695
      %v255 = vpow.pop %v254
      %v256 = vadd.f32 %v255, 1.0
      %v257 = vrcp.pop %v256
      %v258 = vmul.f32 1.0, %v257
      %v259 = vtanh.pop %v252
      %v261 = vrot.slane %v63, 6
      %v263 = vmul.f32 %v258, %v261
      %265 = vrot.lane.b32.xlu0 %v259, 64
      %v266 = vpop.permute.xlu0 %265
      %v268 = vmul.f32 %v258, %v266
      %270 = vrot.lane.b32.xlu0 %v268, 32
      %v271 = vpop.permute.xlu0 %270
      %v273 = vadd.f32 %v263, %v271
      %v274 = vtanh.pop %v273
      %276 = vrot.lane.b32.xlu0 %v274, 64
      %v277 = vpop.permute.xlu0 %276
      %v279 = vmul.f32 %v258, %v277
      %v281 = vrot.slane %v64, 6
      %282 = vrot.lane.b32.xlu0 %v281, 32
      %v283 = vpop.permute.xlu0 %282
      %v284 = vsel %vm75, %v283, 0
      %286 = vmatprep.subr.mxu0 0.0
      %287 = vmatpush1.msra.mxu0 %v50
      %288 = vmatprep.subr.mxu0 0.0
      %289 = vmatpush1.msra.mxu0 %v51
      %290 = vmatprep.subr.mxu0 0.0
      %291 = vmatpush1.msra.mxu0 %v52
      %292 = vmatprep.subr.mxu0 0.0
      %293 = vmatpush1.msra.mxu0 %v53
      %294 = vmatprep.subr.mxu0 0.0
      %295 = vmatpush1.msra.mxu0 0.0
      %296 = vmatprep.subr.mxu0 0.0
      %297 = vmatpush1.msra.mxu0 0.0
      %298 = vmatprep.subr.mxu0 0.0
      %299 = vmatpush1.msra.mxu0 0.0
      %300 = vmatprep.subr.mxu0 0.0
      %301 = vmatpush1.msra.mxu0 0.0
      %302 = vmatprep.subr.mxu0 0.0
      %303 = vmatpush1.msra.mxu0 0.0
      %304 = vmatprep.subr.mxu0 0.0
      %305 = vmatpush1.msra.mxu0 0.0
      %306 = vmatprep.subr.mxu0 0.0
      %307 = vmatpush1.msra.mxu0 0.0
      %308 = vmatprep.subr.mxu0 0.0
      %309 = vmatpush1.msra.mxu0 0.0
      %310 = vmatprep.subr.mxu0 0.0
      %311 = vmatpush1.msra.mxu0 0.0
      %312 = vmatprep.subr.mxu0 0.0
      %313 = vmatpush1.msra.mxu0 0.0
      %314 = vmatprep.subr.mxu0 0.0
      %315 = vmatpush1.msra.mxu0 0.0
      %316 = vmatprep.subr.mxu0 0.0
      %317 = vmatpush1.msra.mxu0 0.0
      %318 = vmatprep.subr.mxu0 0.0
      %319 = vmatpush1.msra.mxu0 0.0
      %320 = vmatprep.subr.mxu0 0.0
      %321 = vmatpush1.msra.mxu0 0.0
      %322 = vmatprep.subr.mxu0 0.0
      %323 = vmatpush1.msra.mxu0 0.0
      %324 = vmatprep.subr.mxu0 0.0
      %325 = vmatpush1.msra.mxu0 0.0
      %326 = vmatprep.subr.mxu0 0.0
      %327 = vmatpush1.msra.mxu0 0.0
      %328 = vmatprep.subr.mxu0 0.0
      %329 = vmatpush1.msra.mxu0 0.0
      %330 = vmatprep.subr.mxu0 0.0
      %331 = vmatpush1.msra.mxu0 0.0
      %332 = vmatprep.subr.mxu0 0.0
      %333 = vmatpush1.msra.mxu0 0.0
      %334 = vmatprep.subr.mxu0 0.0
      %335 = vmatpush1.msra.mxu0 0.0
      %336 = vmatprep.subr.mxu0 0.0
      %337 = vmatpush1.msra.mxu0 0.0
      %338 = vmatprep.subr.mxu0 0.0
      %339 = vmatpush1.msra.mxu0 0.0
      %340 = vmatprep.subr.mxu0 0.0
      %341 = vmatpush1.msra.mxu0 0.0
      %342 = vmatprep.subr.mxu0 0.0
      %343 = vmatpush1.msra.mxu0 0.0
      %344 = vmatprep.subr.mxu0 0.0
      %345 = vmatpush1.msra.mxu0 0.0
      %346 = vmatprep.subr.mxu0 0.0
      %347 = vmatpush1.msra.mxu0 0.0
      %348 = vmatprep.subr.mxu0 0.0
      %349 = vmatpush1.msra.mxu0 0.0
      %350 = vmatprep.mubr.f32.mxu0 0.0
      %351 = vmatmul.mubr.f32.gmra.mrb[0].mxu0 %v284
      %v352 = vpop.f32.mrb[0].mxu0
      %v353 = vadd.f32 0.0, %v352
      %v354 = vpop.f32.mrb[0].mxu0
      %355 = vdwg.mxu0
      %v356 = vadd.f32 %v70, %v353
      %v357 = vxor.u32 %v356, 2147483648
      %v358 = vmul.f32 %v357, 1.442695
      %v359 = vpow.pop %v358
      %v360 = vadd.f32 %v359, 1.0
      %v361 = vrcp.pop %v360
      %v362 = vmul.f32 1.0, %v361
      %v363 = vtanh.pop %v356
      %v365 = vrot.slane %v65, 6
      %v367 = vmul.f32 %v362, %v365
      %369 = vrot.lane.b32.xlu0 %v363, 64
      %v370 = vpop.permute.xlu0 %369
      %v372 = vmul.f32 %v362, %v370
      %374 = vrot.lane.b32.xlu0 %v372, 32
      %v375 = vpop.permute.xlu0 %374
      %v377 = vadd.f32 %v367, %v375
      %v378 = vtanh.pop %v377
      %380 = vrot.lane.b32.xlu0 %v378, 64
      %v381 = vpop.permute.xlu0 %380
      %v383 = vmul.f32 %v362, %v381
      %385 = vrot.lane.b32.xlu0 %v175, 32
      %v386 = vpop.permute.xlu0 %385
      %v387 = vsel %vm75, %v386, 0
      %389 = vmatprep.subr.mxu0 0.0
      %390 = vmatpush1.msra.mxu0 %v40
      %391 = vmatprep.subr.mxu0 0.0
      %392 = vmatpush1.msra.mxu0 %v41
      %393 = vmatprep.subr.mxu0 0.0
      %394 = vmatpush1.msra.mxu0 %v42
      %395 = vmatprep.subr.mxu0 0.0
      %396 = vmatpush1.msra.mxu0 %v43
      %397 = vmatprep.subr.mxu0 0.0
      %398 = vmatpush1.msra.mxu0 0.0
      %399 = vmatprep.subr.mxu0 0.0
      %400 = vmatpush1.msra.mxu0 0.0
      %401 = vmatprep.subr.mxu0 0.0
      %402 = vmatpush1.msra.mxu0 0.0
      %403 = vmatprep.subr.mxu0 0.0
      %404 = vmatpush1.msra.mxu0 0.0
      %405 = vmatprep.subr.mxu0 0.0
      %406 = vmatpush1.msra.mxu0 0.0
      %407 = vmatprep.subr.mxu0 0.0
      %408 = vmatpush1.msra.mxu0 0.0
      %409 = vmatprep.subr.mxu0 0.0
      %410 = vmatpush1.msra.mxu0 0.0
      %411 = vmatprep.subr.mxu0 0.0
      %412 = vmatpush1.msra.mxu0 0.0
      %413 = vmatprep.subr.mxu0 0.0
      %414 = vmatpush1.msra.mxu0 0.0
      %415 = vmatprep.subr.mxu0 0.0
      %416 = vmatpush1.msra.mxu0 0.0
      %417 = vmatprep.subr.mxu0 0.0
      %418 = vmatpush1.msra.mxu0 0.0
      %419 = vmatprep.subr.mxu0 0.0
      %420 = vmatpush1.msra.mxu0 0.0
      %421 = vmatprep.subr.mxu0 0.0
      %422 = vmatpush1.msra.mxu0 0.0
      %423 = vmatprep.subr.mxu0 0.0
      %424 = vmatpush1.msra.mxu0 0.0
      %425 = vmatprep.subr.mxu0 0.0
      %426 = vmatpush1.msra.mxu0 0.0
      %427 = vmatprep.subr.mxu0 0.0
      %428 = vmatpush1.msra.mxu0 0.0
      %429 = vmatprep.subr.mxu0 0.0
      %430 = vmatpush1.msra.mxu0 0.0
      %431 = vmatprep.subr.mxu0 0.0
      %432 = vmatpush1.msra.mxu0 0.0
      %433 = vmatprep.subr.mxu0 0.0
      %434 = vmatpush1.msra.mxu0 0.0
      %435 = vmatprep.subr.mxu0 0.0
      %436 = vmatpush1.msra.mxu0 0.0
      %437 = vmatprep.subr.mxu0 0.0
      %438 = vmatpush1.msra.mxu0 0.0
      %439 = vmatprep.subr.mxu0 0.0
      %440 = vmatpush1.msra.mxu0 0.0
      %441 = vmatprep.subr.mxu0 0.0
      %442 = vmatpush1.msra.mxu0 0.0
      %443 = vmatprep.subr.mxu0 0.0
      %444 = vmatpush1.msra.mxu0 0.0
      %445 = vmatprep.subr.mxu0 0.0
      %446 = vmatpush1.msra.mxu0 0.0
      %447 = vmatprep.subr.mxu0 0.0
      %448 = vmatpush1.msra.mxu0 0.0
      %449 = vmatprep.subr.mxu0 0.0
      %450 = vmatpush1.msra.mxu0 0.0
      %451 = vmatprep.subr.mxu0 0.0
      %452 = vmatpush1.msra.mxu0 0.0
      %453 = vmatprep.mubr.f32.mxu0 0.0
      %454 = vmatmul.mubr.f32.gmra.mrb[0].mxu0 %v387
      %v455 = vpop.f32.mrb[0].mxu0
      %v456 = vadd.f32 0.0, %v455
      %v457 = vpop.f32.mrb[0].mxu0
      %458 = vdwg.mxu0
      %v460 = vrot.slane %v456, 6
      %v462 = vadd.f32 %v68, %v460
      %v463 = vxor.u32 %v462, 2147483648
      %v464 = vmul.f32 %v463, 1.442695
      %v465 = vpow.pop %v464
      %v466 = vadd.f32 %v465, 1.0
      %v467 = vrcp.pop %v466
      %v468 = vmul.f32 1.0, %v467
      %v469 = vtanh.pop %v462
      %v471 = vrot.slane %v169, 6
      %v473 = vmul.f32 %v468, %v471
      %475 = vrot.lane.b32.xlu0 %v469, 64
      %v476 = vpop.permute.xlu0 %475
      %v478 = vmul.f32 %v468, %v476
      %480 = vrot.lane.b32.xlu0 %v478, 32
      %v481 = vpop.permute.xlu0 %480
      %v483 = vadd.f32 %v473, %v481
      %v484 = vtanh.pop %v483
      %486 = vrot.lane.b32.xlu0 %v484, 64
      %v487 = vpop.permute.xlu0 %486
      %v489 = vmul.f32 %v468, %v487
      %491 = vrot.lane.b32.xlu0 %v279, 32
      %v492 = vpop.permute.xlu0 %491
      %v493 = vsel %vm75, %v492, 0
      %495 = vmatprep.subr.mxu0 0.0
      %496 = vmatpush1.msra.mxu0 %v45
      %497 = vmatprep.subr.mxu0 0.0
      %498 = vmatpush1.msra.mxu0 %v46
      %499 = vmatprep.subr.mxu0 0.0
      %500 = vmatpush1.msra.mxu0 %v47
      %501 = vmatprep.subr.mxu0 0.0
      %502 = vmatpush1.msra.mxu0 %v48
      %503 = vmatprep.subr.mxu0 0.0
      %504 = vmatpush1.msra.mxu0 0.0
      %505 = vmatprep.subr.mxu0 0.0
      %506 = vmatpush1.msra.mxu0 0.0
      %507 = vmatprep.subr.mxu0 0.0
      %508 = vmatpush1.msra.mxu0 0.0
      %509 = vmatprep.subr.mxu0 0.0
      %510 = vmatpush1.msra.mxu0 0.0
      %511 = vmatprep.subr.mxu0 0.0
      %512 = vmatpush1.msra.mxu0 0.0
      %513 = vmatprep.subr.mxu0 0.0
      %514 = vmatpush1.msra.mxu0 0.0
      %515 = vmatprep.subr.mxu0 0.0
      %516 = vmatpush1.msra.mxu0 0.0
      %517 = vmatprep.subr.mxu0 0.0
      %518 = vmatpush1.msra.mxu0 0.0
      %519 = vmatprep.subr.mxu0 0.0
      %520 = vmatpush1.msra.mxu0 0.0
      %521 = vmatprep.subr.mxu0 0.0
      %522 = vmatpush1.msra.mxu0 0.0
      %523 = vmatprep.subr.mxu0 0.0
      %524 = vmatpush1.msra.mxu0 0.0
      %525 = vmatprep.subr.mxu0 0.0
      %526 = vmatpush1.msra.mxu0 0.0
      %527 = vmatprep.subr.mxu0 0.0
      %528 = vmatpush1.msra.mxu0 0.0
      %529 = vmatprep.subr.mxu0 0.0
      %530 = vmatpush1.msra.mxu0 0.0
      %531 = vmatprep.subr.mxu0 0.0
      %532 = vmatpush1.msra.mxu0 0.0
      %533 = vmatprep.subr.mxu0 0.0
      %534 = vmatpush1.msra.mxu0 0.0
      %535 = vmatprep.subr.mxu0 0.0
      %536 = vmatpush1.msra.mxu0 0.0
      %537 = vmatprep.subr.mxu0 0.0
      %538 = vmatpush1.msra.mxu0 0.0
      %539 = vmatprep.subr.mxu0 0.0
      %540 = vmatpush1.msra.mxu0 0.0
      %541 = vmatprep.subr.mxu0 0.0
      %542 = vmatpush1.msra.mxu0 0.0
      %543 = vmatprep.subr.mxu0 0.0
      %544 = vmatpush1.msra.mxu0 0.0
      %545 = vmatprep.subr.mxu0 0.0
      %546 = vmatpush1.msra.mxu0 0.0
      %547 = vmatprep.subr.mxu0 0.0
      %548 = vmatpush1.msra.mxu0 0.0
      %549 = vmatprep.subr.mxu0 0.0
      %550 = vmatpush1.msra.mxu0 0.0
      %551 = vmatprep.subr.mxu0 0.0
      %552 = vmatpush1.msra.mxu0 0.0
      %553 = vmatprep.subr.mxu0 0.0
      %554 = vmatpush1.msra.mxu0 0.0
      %555 = vmatprep.subr.mxu0 0.0
      %556 = vmatpush1.msra.mxu0 0.0
      %557 = vmatprep.subr.mxu0 0.0
      %558 = vmatpush1.msra.mxu0 0.0
      %559 = vmatprep.mubr.f32.mxu0 0.0
      %560 = vmatmul.mubr.f32.gmra.mrb[0].mxu0 %v493
      %v561 = vpop.f32.mrb[0].mxu0
      %v562 = vadd.f32 0.0, %v561
      %v563 = vpop.f32.mrb[0].mxu0
      %564 = vdwg.mxu0
      %v566 = vrot.slane %v562, 6
      %v568 = vadd.f32 %v69, %v566
      %v569 = vxor.u32 %v568, 2147483648
      %v570 = vmul.f32 %v569, 1.442695
      %v571 = vpow.pop %v570
      %v572 = vadd.f32 %v571, 1.0
      %v573 = vrcp.pop %v572
      %v574 = vmul.f32 1.0, %v573
      %v575 = vtanh.pop %v568
      %v577 = vrot.slane %v273, 6
      %v579 = vmul.f32 %v574, %v577
      %581 = vrot.lane.b32.xlu0 %v575, 64
      %v582 = vpop.permute.xlu0 %581
      %v584 = vmul.f32 %v574, %v582
      %586 = vrot.lane.b32.xlu0 %v584, 32
      %v587 = vpop.permute.xlu0 %586
      %v589 = vadd.f32 %v579, %v587
      %v590 = vtanh.pop %v589
      %592 = vrot.lane.b32.xlu0 %v590, 64
      %v593 = vpop.permute.xlu0 %592
      %v595 = vmul.f32 %v574, %v593
      %597 = vrot.lane.b32.xlu0 %v383, 32
      %v598 = vpop.permute.xlu0 %597
      %v599 = vsel %vm75, %v598, 0
      %601 = vmatprep.subr.mxu0 0.0
      %602 = vmatpush1.msra.mxu0 %v50
      %603 = vmatprep.subr.mxu0 0.0
      %604 = vmatpush1.msra.mxu0 %v51
      %605 = vmatprep.subr.mxu0 0.0
      %606 = vmatpush1.msra.mxu0 %v52
      %607 = vmatprep.subr.mxu0 0.0
      %608 = vmatpush1.msra.mxu0 %v53
      %609 = vmatprep.subr.mxu0 0.0
      %610 = vmatpush1.msra.mxu0 0.0
      %611 = vmatprep.subr.mxu0 0.0
      %612 = vmatpush1.msra.mxu0 0.0
      %613 = vmatprep.subr.mxu0 0.0
      %614 = vmatpush1.msra.mxu0 0.0
      %615 = vmatprep.subr.mxu0 0.0
      %616 = vmatpush1.msra.mxu0 0.0
      %617 = vmatprep.subr.mxu0 0.0
      %618 = vmatpush1.msra.mxu0 0.0
      %619 = vmatprep.subr.mxu0 0.0
      %620 = vmatpush1.msra.mxu0 0.0
      %621 = vmatprep.subr.mxu0 0.0
      %622 = vmatpush1.msra.mxu0 0.0
      %623 = vmatprep.subr.mxu0 0.0
      %624 = vmatpush1.msra.mxu0 0.0
      %625 = vmatprep.subr.mxu0 0.0
      %626 = vmatpush1.msra.mxu0 0.0
      %627 = vmatprep.subr.mxu0 0.0
      %628 = vmatpush1.msra.mxu0 0.0
      %629 = vmatprep.subr.mxu0 0.0
      %630 = vmatpush1.msra.mxu0 0.0
      %631 = vmatprep.subr.mxu0 0.0
      %632 = vmatpush1.msra.mxu0 0.0
      %633 = vmatprep.subr.mxu0 0.0
      %634 = vmatpush1.msra.mxu0 0.0
      %635 = vmatprep.subr.mxu0 0.0
      %636 = vmatpush1.msra.mxu0 0.0
      %637 = vmatprep.subr.mxu0 0.0
      %638 = vmatpush1.msra.mxu0 0.0
      %639 = vmatprep.subr.mxu0 0.0
      %640 = vmatpush1.msra.mxu0 0.0
      %641 = vmatprep.subr.mxu0 0.0
      %642 = vmatpush1.msra.mxu0 0.0
      %643 = vmatprep.subr.mxu0 0.0
      %644 = vmatpush1.msra.mxu0 0.0
      %645 = vmatprep.subr.mxu0 0.0
      %646 = vmatpush1.msra.mxu0 0.0
      %647 = vmatprep.subr.mxu0 0.0
      %648 = vmatpush1.msra.mxu0 0.0
      %649 = vmatprep.subr.mxu0 0.0
      %650 = vmatpush1.msra.mxu0 0.0
      %651 = vmatprep.subr.mxu0 0.0
      %652 = vmatpush1.msra.mxu0 0.0
      %653 = vmatprep.subr.mxu0 0.0
      %654 = vmatpush1.msra.mxu0 0.0
      %655 = vmatprep.subr.mxu0 0.0
      %656 = vmatpush1.msra.mxu0 0.0
      %657 = vmatprep.subr.mxu0 0.0
      %658 = vmatpush1.msra.mxu0 0.0
      %659 = vmatprep.subr.mxu0 0.0
      %660 = vmatpush1.msra.mxu0 0.0
      %661 = vmatprep.subr.mxu0 0.0
      %662 = vmatpush1.msra.mxu0 0.0
      %663 = vmatprep.subr.mxu0 0.0
      %664 = vmatpush1.msra.mxu0 0.0
      %665 = vmatprep.mubr.f32.mxu0 0.0
      %666 = vmatmul.mubr.f32.gmra.mrb[0].mxu0 %v599
      %v667 = vpop.f32.mrb[0].mxu0
      %v668 = vadd.f32 0.0, %v667
      %v669 = vpop.f32.mrb[0].mxu0
      %670 = vdwg.mxu0
      %v672 = vrot.slane %v668, 6
      %v674 = vadd.f32 %v70, %v672
      %v675 = vxor.u32 %v674, 2147483648
      %v676 = vmul.f32 %v675, 1.442695
      %v677 = vpow.pop %v676
      %v678 = vadd.f32 %v677, 1.0
      %v679 = vrcp.pop %v678
      %v680 = vmul.f32 1.0, %v679
      %v681 = vtanh.pop %v674
      %v683 = vrot.slane %v377, 6
      %v685 = vmul.f32 %v680, %v683
      %687 = vrot.lane.b32.xlu0 %v681, 64
      %v688 = vpop.permute.xlu0 %687
      %v690 = vmul.f32 %v680, %v688
      %692 = vrot.lane.b32.xlu0 %v690, 32
      %v693 = vpop.permute.xlu0 %692
      %v695 = vadd.f32 %v685, %v693
      %v696 = vtanh.pop %v695
      %698 = vrot.lane.b32.xlu0 %v696, 64
      %v699 = vpop.permute.xlu0 %698
      %v701 = vmul.f32 %v680, %v699
      %v703 = vrot.slane %v489, 2
      %704 = vrot.lane.b32.xlu0 %v703, 32
      %v705 = vpop.permute.xlu0 %704
      %v706 = vsel %vm75, %v705, 0
      %708 = vmatprep.subr.mxu0 0.0
      %709 = vmatpush1.msra.mxu0 %v40
      %710 = vmatprep.subr.mxu0 0.0
      %711 = vmatpush1.msra.mxu0 %v41
      %712 = vmatprep.subr.mxu0 0.0
      %713 = vmatpush1.msra.mxu0 %v42
      %714 = vmatprep.subr.mxu0 0.0
      %715 = vmatpush1.msra.mxu0 %v43
      %716 = vmatprep.subr.mxu0 0.0
      %717 = vmatpush1.msra.mxu0 0.0
      %718 = vmatprep.subr.mxu0 0.0
      %719 = vmatpush1.msra.mxu0 0.0
      %720 = vmatprep.subr.mxu0 0.0
      %721 = vmatpush1.msra.mxu0 0.0
      %722 = vmatprep.subr.mxu0 0.0
      %723 = vmatpush1.msra.mxu0 0.0
      %724 = vmatprep.subr.mxu0 0.0
      %725 = vmatpush1.msra.mxu0 0.0
      %726 = vmatprep.subr.mxu0 0.0
      %727 = vmatpush1.msra.mxu0 0.0
      %728 = vmatprep.subr.mxu0 0.0
      %729 = vmatpush1.msra.mxu0 0.0
      %730 = vmatprep.subr.mxu0 0.0
      %731 = vmatpush1.msra.mxu0 0.0
      %732 = vmatprep.subr.mxu0 0.0
      %733 = vmatpush1.msra.mxu0 0.0
      %734 = vmatprep.subr.mxu0 0.0
      %735 = vmatpush1.msra.mxu0 0.0
      %736 = vmatprep.subr.mxu0 0.0
      %737 = vmatpush1.msra.mxu0 0.0
      %738 = vmatprep.subr.mxu0 0.0
      %739 = vmatpush1.msra.mxu0 0.0
      %740 = vmatprep.subr.mxu0 0.0
      %741 = vmatpush1.msra.mxu0 0.0
      %742 = vmatprep.subr.mxu0 0.0
      %743 = vmatpush1.msra.mxu0 0.0
      %744 = vmatprep.subr.mxu0 0.0
      %745 = vmatpush1.msra.mxu0 0.0
      %746 = vmatprep.subr.mxu0 0.0
      %747 = vmatpush1.msra.mxu0 0.0
      %748 = vmatprep.subr.mxu0 0.0
      %749 = vmatpush1.msra.mxu0 0.0
      %750 = vmatprep.subr.mxu0 0.0
      %751 = vmatpush1.msra.mxu0 0.0
      %752 = vmatprep.subr.mxu0 0.0
      %753 = vmatpush1.msra.mxu0 0.0
      %754 = vmatprep.subr.mxu0 0.0
      %755 = vmatpush1.msra.mxu0 0.0
      %756 = vmatprep.subr.mxu0 0.0
      %757 = vmatpush1.msra.mxu0 0.0
      %758 = vmatprep.subr.mxu0 0.0
      %759 = vmatpush1.msra.mxu0 0.0
      %760 = vmatprep.subr.mxu0 0.0
      %761 = vmatpush1.msra.mxu0 0.0
      %762 = vmatprep.subr.mxu0 0.0
      %763 = vmatpush1.msra.mxu0 0.0
      %764 = vmatprep.subr.mxu0 0.0
      %765 = vmatpush1.msra.mxu0 0.0
      %766 = vmatprep.subr.mxu0 0.0
      %767 = vmatpush1.msra.mxu0 0.0
      %768 = vmatprep.subr.mxu0 0.0
      %769 = vmatpush1.msra.mxu0 0.0
      %770 = vmatprep.subr.mxu0 0.0
      %771 = vmatpush1.msra.mxu0 0.0
      %772 = vmatprep.mubr.f32.mxu0 0.0
      %773 = vmatmul.mubr.f32.gmra.mrb[0].mxu0 %v706
      %v774 = vpop.f32.mrb[0].mxu0
      %v775 = vadd.f32 0.0, %v774
      %v776 = vpop.f32.mrb[0].mxu0
      %777 = vdwg.mxu0
      %v779 = vrot.slane %v775, 4
      %v781 = vadd.f32 %v68, %v779
      %v782 = vxor.u32 %v781, 2147483648
      %v783 = vmul.f32 %v782, 1.442695
      %v784 = vpow.pop %v783
      %v785 = vadd.f32 %v784, 1.0
      %v786 = vrcp.pop %v785
      %v787 = vmul.f32 1.0, %v786
      %v788 = vtanh.pop %v781
      %v790 = vrot.slane %v483, 6
      %v792 = vmul.f32 %v787, %v790
      %794 = vrot.lane.b32.xlu0 %v788, 64
      %v795 = vpop.permute.xlu0 %794
      %v797 = vmul.f32 %v787, %v795
      %799 = vrot.lane.b32.xlu0 %v797, 32
      %v800 = vpop.permute.xlu0 %799
      %v802 = vadd.f32 %v792, %v800
      %v803 = vtanh.pop %v802
      %805 = vrot.lane.b32.xlu0 %v803, 64
      %v806 = vpop.permute.xlu0 %805
      %v808 = vmul.f32 %v787, %v806
      %v810 = vrot.slane %v595, 2
      %811 = vrot.lane.b32.xlu0 %v810, 32
      %v812 = vpop.permute.xlu0 %811
      %v813 = vsel %vm75, %v812, 0
      %815 = vmatprep.subr.mxu0 0.0
      %816 = vmatpush1.msra.mxu0 %v45
      %817 = vmatprep.subr.mxu0 0.0
      %818 = vmatpush1.msra.mxu0 %v46
      %819 = vmatprep.subr.mxu0 0.0
      %820 = vmatpush1.msra.mxu0 %v47
      %821 = vmatprep.subr.mxu0 0.0
      %822 = vmatpush1.msra.mxu0 %v48
      %823 = vmatprep.subr.mxu0 0.0
      %824 = vmatpush1.msra.mxu0 0.0
      %825 = vmatprep.subr.mxu0 0.0
      %826 = vmatpush1.msra.mxu0 0.0
      %827 = vmatprep.subr.mxu0 0.0
      %828 = vmatpush1.msra.mxu0 0.0
      %829 = vmatprep.subr.mxu0 0.0
      %830 = vmatpush1.msra.mxu0 0.0
      %831 = vmatprep.subr.mxu0 0.0
      %832 = vmatpush1.msra.mxu0 0.0
      %833 = vmatprep.subr.mxu0 0.0
      %834 = vmatpush1.msra.mxu0 0.0
      %835 = vmatprep.subr.mxu0 0.0
      %836 = vmatpush1.msra.mxu0 0.0
      %837 = vmatprep.subr.mxu0 0.0
      %838 = vmatpush1.msra.mxu0 0.0
      %839 = vmatprep.subr.mxu0 0.0
      %840 = vmatpush1.msra.mxu0 0.0
      %841 = vmatprep.subr.mxu0 0.0
      %842 = vmatpush1.msra.mxu0 0.0
      %843 = vmatprep.subr.mxu0 0.0
      %844 = vmatpush1.msra.mxu0 0.0
      %845 = vmatprep.subr.mxu0 0.0
      %846 = vmatpush1.msra.mxu0 0.0
      %847 = vmatprep.subr.mxu0 0.0
      %848 = vmatpush1.msra.mxu0 0.0
      %849 = vmatprep.subr.mxu0 0.0
      %850 = vmatpush1.msra.mxu0 0.0
      %851 = vmatprep.subr.mxu0 0.0
      %852 = vmatpush1.msra.mxu0 0.0
      %853 = vmatprep.subr.mxu0 0.0
      %854 = vmatpush1.msra.mxu0 0.0
      %855 = vmatprep.subr.mxu0 0.0
      %856 = vmatpush1.msra.mxu0 0.0
      %857 = vmatprep.subr.mxu0 0.0
      %858 = vmatpush1.msra.mxu0 0.0
      %859 = vmatprep.subr.mxu0 0.0
      %860 = vmatpush1.msra.mxu0 0.0
      %861 = vmatprep.subr.mxu0 0.0
      %862 = vmatpush1.msra.mxu0 0.0
      %863 = vmatprep.subr.mxu0 0.0
      %864 = vmatpush1.msra.mxu0 0.0
      %865 = vmatprep.subr.mxu0 0.0
      %866 = vmatpush1.msra.mxu0 0.0
      %867 = vmatprep.subr.mxu0 0.0
      %868 = vmatpush1.msra.mxu0 0.0
      %869 = vmatprep.subr.mxu0 0.0
      %870 = vmatpush1.msra.mxu0 0.0
      %871 = vmatprep.subr.mxu0 0.0
      %872 = vmatpush1.msra.mxu0 0.0
      %873 = vmatprep.subr.mxu0 0.0
      %874 = vmatpush1.msra.mxu0 0.0
      %875 = vmatprep.subr.mxu0 0.0
      %876 = vmatpush1.msra.mxu0 0.0
      %877 = vmatprep.subr.mxu0 0.0
      %878 = vmatpush1.msra.mxu0 0.0
      %879 = vmatprep.mubr.f32.mxu0 0.0
      %880 = vmatmul.mubr.f32.gmra.mrb[0].mxu0 %v813
      %v881 = vpop.f32.mrb[0].mxu0
      %v882 = vadd.f32 0.0, %v881
      %v883 = vpop.f32.mrb[0].mxu0
      %884 = vdwg.mxu0
      %v886 = vrot.slane %v882, 4
      %v888 = vadd.f32 %v69, %v886
      %v889 = vxor.u32 %v888, 2147483648
      %v890 = vmul.f32 %v889, 1.442695
      %v891 = vpow.pop %v890
      %v892 = vadd.f32 %v891, 1.0
      %v893 = vrcp.pop %v892
      %v894 = vmul.f32 1.0, %v893
      %v895 = vtanh.pop %v888
      %v897 = vrot.slane %v589, 6
      %v899 = vmul.f32 %v894, %v897
      %901 = vrot.lane.b32.xlu0 %v895, 64
      %v902 = vpop.permute.xlu0 %901
      %v904 = vmul.f32 %v894, %v902
      %906 = vrot.lane.b32.xlu0 %v904, 32
      %v907 = vpop.permute.xlu0 %906
      %v909 = vadd.f32 %v899, %v907
      %v910 = vtanh.pop %v909
      %912 = vrot.lane.b32.xlu0 %v910, 64
      %v913 = vpop.permute.xlu0 %912
      %v915 = vmul.f32 %v894, %v913
      %v917 = vrot.slane %v701, 2
      %918 = vrot.lane.b32.xlu0 %v917, 32
      %v919 = vpop.permute.xlu0 %918
      %v920 = vsel %vm75, %v919, 0
      %922 = vmatprep.subr.mxu0 0.0
      %923 = vmatpush1.msra.mxu0 %v50
      %924 = vmatprep.subr.mxu0 0.0
      %925 = vmatpush1.msra.mxu0 %v51
      %926 = vmatprep.subr.mxu0 0.0
      %927 = vmatpush1.msra.mxu0 %v52
      %928 = vmatprep.subr.mxu0 0.0
      %929 = vmatpush1.msra.mxu0 %v53
      %930 = vmatprep.subr.mxu0 0.0
      %931 = vmatpush1.msra.mxu0 0.0
      %932 = vmatprep.subr.mxu0 0.0
      %933 = vmatpush1.msra.mxu0 0.0
      %934 = vmatprep.subr.mxu0 0.0
      %935 = vmatpush1.msra.mxu0 0.0
      %936 = vmatprep.subr.mxu0 0.0
      %937 = vmatpush1.msra.mxu0 0.0
      %938 = vmatprep.subr.mxu0 0.0
      %939 = vmatpush1.msra.mxu0 0.0
      %940 = vmatprep.subr.mxu0 0.0
      %941 = vmatpush1.msra.mxu0 0.0
      %942 = vmatprep.subr.mxu0 0.0
      %943 = vmatpush1.msra.mxu0 0.0
      %944 = vmatprep.subr.mxu0 0.0
      %945 = vmatpush1.msra.mxu0 0.0
      %946 = vmatprep.subr.mxu0 0.0
      %947 = vmatpush1.msra.mxu0 0.0
      %948 = vmatprep.subr.mxu0 0.0
      %949 = vmatpush1.msra.mxu0 0.0
      %950 = vmatprep.subr.mxu0 0.0
      %951 = vmatpush1.msra.mxu0 0.0
      %952 = vmatprep.subr.mxu0 0.0
      %953 = vmatpush1.msra.mxu0 0.0
      %954 = vmatprep.subr.mxu0 0.0
      %955 = vmatpush1.msra.mxu0 0.0
      %956 = vmatprep.subr.mxu0 0.0
      %957 = vmatpush1.msra.mxu0 0.0
      %958 = vmatprep.subr.mxu0 0.0
      %959 = vmatpush1.msra.mxu0 0.0
      %960 = vmatprep.subr.mxu0 0.0
      %961 = vmatpush1.msra.mxu0 0.0
      %962 = vmatprep.subr.mxu0 0.0
      %963 = vmatpush1.msra.mxu0 0.0
      %964 = vmatprep.subr.mxu0 0.0
      %965 = vmatpush1.msra.mxu0 0.0
      %966 = vmatprep.subr.mxu0 0.0
      %967 = vmatpush1.msra.mxu0 0.0
      %968 = vmatprep.subr.mxu0 0.0
      %969 = vmatpush1.msra.mxu0 0.0
      %970 = vmatprep.subr.mxu0 0.0
      %971 = vmatpush1.msra.mxu0 0.0
      %972 = vmatprep.subr.mxu0 0.0
      %973 = vmatpush1.msra.mxu0 0.0
      %974 = vmatprep.subr.mxu0 0.0
      %975 = vmatpush1.msra.mxu0 0.0
      %976 = vmatprep.subr.mxu0 0.0
      %977 = vmatpush1.msra.mxu0 0.0
      %978 = vmatprep.subr.mxu0 0.0
      %979 = vmatpush1.msra.mxu0 0.0
      %980 = vmatprep.subr.mxu0 0.0
      %981 = vmatpush1.msra.mxu0 0.0
      %982 = vmatprep.subr.mxu0 0.0
      %983 = vmatpush1.msra.mxu0 0.0
      %984 = vmatprep.subr.mxu0 0.0
      %985 = vmatpush1.msra.mxu0 0.0
      %986 = vmatprep.mubr.f32.mxu0 0.0
      %987 = vmatmul.mubr.f32.gmra.mrb[0].mxu0 %v920
      %v988 = vpop.f32.mrb[0].mxu0
      %v989 = vadd.f32 0.0, %v988
      %v990 = vpop.f32.mrb[0].mxu0
      %991 = vdwg.mxu0
      %v993 = vrot.slane %v989, 4
      %v995 = vadd.f32 %v70, %v993
      %v996 = vxor.u32 %v995, 2147483648
      %v997 = vmul.f32 %v996, 1.442695
      %v998 = vpow.pop %v997
      %v999 = vadd.f32 %v998, 1.0
      %v1000 = vrcp.pop %v999
      %v1001 = vmul.f32 1.0, %v1000
      %v1002 = vtanh.pop %v995
      %v1004 = vrot.slane %v695, 6
      %v1006 = vmul.f32 %v1001, %v1004
      %1008 = vrot.lane.b32.xlu0 %v1002, 64
      %v1009 = vpop.permute.xlu0 %1008
      %v1011 = vmul.f32 %v1001, %v1009
      %1013 = vrot.lane.b32.xlu0 %v1011, 32
      %v1014 = vpop.permute.xlu0 %1013
      %v1016 = vadd.f32 %v1006, %v1014
      %v1017 = vtanh.pop %v1016
      %1019 = vrot.lane.b32.xlu0 %v1017, 64
      %v1020 = vpop.permute.xlu0 %1019
      %v1022 = vmul.f32 %v1001, %v1020
      %v1024 = vrot.slane %v808, 4
      %1025 = vrot.lane.b32.xlu0 %v1024, 32
      %v1026 = vpop.permute.xlu0 %1025
      %v1027 = vsel %vm75, %v1026, 0
      %1029 = vmatprep.subr.mxu0 0.0
      %1030 = vmatpush1.msra.mxu0 %v40
      %1031 = vmatprep.subr.mxu0 0.0
      %1032 = vmatpush1.msra.mxu0 %v41
      %1033 = vmatprep.subr.mxu0 0.0
      %1034 = vmatpush1.msra.mxu0 %v42
      %1035 = vmatprep.subr.mxu0 0.0
      %1036 = vmatpush1.msra.mxu0 %v43
      %1037 = vmatprep.subr.mxu0 0.0
      %1038 = vmatpush1.msra.mxu0 0.0
      %1039 = vmatprep.subr.mxu0 0.0
      %1040 = vmatpush1.msra.mxu0 0.0
      %1041 = vmatprep.subr.mxu0 0.0
      %1042 = vmatpush1.msra.mxu0 0.0
      %1043 = vmatprep.subr.mxu0 0.0
      %1044 = vmatpush1.msra.mxu0 0.0
      %1045 = vmatprep.subr.mxu0 0.0
      %1046 = vmatpush1.msra.mxu0 0.0
      %1047 = vmatprep.subr.mxu0 0.0
      %1048 = vmatpush1.msra.mxu0 0.0
      %1049 = vmatprep.subr.mxu0 0.0
      %1050 = vmatpush1.msra.mxu0 0.0
      %1051 = vmatprep.subr.mxu0 0.0
      %1052 = vmatpush1.msra.mxu0 0.0
      %1053 = vmatprep.subr.mxu0 0.0
      %1054 = vmatpush1.msra.mxu0 0.0
      %1055 = vmatprep.subr.mxu0 0.0
      %1056 = vmatpush1.msra.mxu0 0.0
      %1057 = vmatprep.subr.mxu0 0.0
      %1058 = vmatpush1.msra.mxu0 0.0
      %1059 = vmatprep.subr.mxu0 0.0
      %1060 = vmatpush1.msra.mxu0 0.0
      %1061 = vmatprep.subr.mxu0 0.0
      %1062 = vmatpush1.msra.mxu0 0.0
      %1063 = vmatprep.subr.mxu0 0.0
      %1064 = vmatpush1.msra.mxu0 0.0
      %1065 = vmatprep.subr.mxu0 0.0
      %1066 = vmatpush1.msra.mxu0 0.0
      %1067 = vmatprep.subr.mxu0 0.0
      %1068 = vmatpush1.msra.mxu0 0.0
      %1069 = vmatprep.subr.mxu0 0.0
      %1070 = vmatpush1.msra.mxu0 0.0
      %1071 = vmatprep.subr.mxu0 0.0
      %1072 = vmatpush1.msra.mxu0 0.0
      %1073 = vmatprep.subr.mxu0 0.0
      %1074 = vmatpush1.msra.mxu0 0.0
      %1075 = vmatprep.subr.mxu0 0.0
      %1076 = vmatpush1.msra.mxu0 0.0
      %1077 = vmatprep.subr.mxu0 0.0
      %1078 = vmatpush1.msra.mxu0 0.0
      %1079 = vmatprep.subr.mxu0 0.0
      %1080 = vmatpush1.msra.mxu0 0.0
      %1081 = vmatprep.subr.mxu0 0.0
      %1082 = vmatpush1.msra.mxu0 0.0
      %1083 = vmatprep.subr.mxu0 0.0
      %1084 = vmatpush1.msra.mxu0 0.0
      %1085 = vmatprep.subr.mxu0 0.0
      %1086 = vmatpush1.msra.mxu0 0.0
      %1087 = vmatprep.subr.mxu0 0.0
      %1088 = vmatpush1.msra.mxu0 0.0
      %1089 = vmatprep.subr.mxu0 0.0
      %1090 = vmatpush1.msra.mxu0 0.0
      %1091 = vmatprep.subr.mxu0 0.0
      %1092 = vmatpush1.msra.mxu0 0.0
      %1093 = vmatprep.mubr.f32.mxu0 0.0
      %1094 = vmatmul.mubr.f32.gmra.mrb[0].mxu0 %v1027
      %v1095 = vpop.f32.mrb[0].mxu0
      %v1096 = vadd.f32 0.0, %v1095
      %v1097 = vpop.f32.mrb[0].mxu0
      %1098 = vdwg.mxu0
      %v1100 = vrot.slane %v1096, 2
      %v1102 = vadd.f32 %v68, %v1100
      %v1103 = vxor.u32 %v1102, 2147483648
      %v1104 = vmul.f32 %v1103, 1.442695
      %v1105 = vpow.pop %v1104
      %v1106 = vadd.f32 %v1105, 1.0
      %v1107 = vrcp.pop %v1106
      %v1108 = vmul.f32 1.0, %v1107
      %v1109 = vtanh.pop %v1102
      %v1111 = vrot.slane %v802, 6
      %v1113 = vmul.f32 %v1108, %v1111
      %1115 = vrot.lane.b32.xlu0 %v1109, 64
      %v1116 = vpop.permute.xlu0 %1115
      %v1118 = vmul.f32 %v1108, %v1116
      %1120 = vrot.lane.b32.xlu0 %v1118, 32
      %v1121 = vpop.permute.xlu0 %1120
      %v1123 = vadd.f32 %v1113, %v1121
      %v1124 = vtanh.pop %v1123
      %1126 = vrot.lane.b32.xlu0 %v1124, 64
      %v1127 = vpop.permute.xlu0 %1126
      %v1129 = vmul.f32 %v1108, %v1127
      %v1131 = vrot.slane %v915, 4
      %1132 = vrot.lane.b32.xlu0 %v1131, 32
      %v1133 = vpop.permute.xlu0 %1132
      %v1134 = vsel %vm75, %v1133, 0
      %1136 = vmatprep.subr.mxu0 0.0
      %1137 = vmatpush1.msra.mxu0 %v45
      %1138 = vmatprep.subr.mxu0 0.0
      %1139 = vmatpush1.msra.mxu0 %v46
      %1140 = vmatprep.subr.mxu0 0.0
      %1141 = vmatpush1.msra.mxu0 %v47
      %1142 = vmatprep.subr.mxu0 0.0
      %1143 = vmatpush1.msra.mxu0 %v48
      %1144 = vmatprep.subr.mxu0 0.0
      %1145 = vmatpush1.msra.mxu0 0.0
      %1146 = vmatprep.subr.mxu0 0.0
      %1147 = vmatpush1.msra.mxu0 0.0
      %1148 = vmatprep.subr.mxu0 0.0
      %1149 = vmatpush1.msra.mxu0 0.0
      %1150 = vmatprep.subr.mxu0 0.0
      %1151 = vmatpush1.msra.mxu0 0.0
      %1152 = vmatprep.subr.mxu0 0.0
      %1153 = vmatpush1.msra.mxu0 0.0
      %1154 = vmatprep.subr.mxu0 0.0
      %1155 = vmatpush1.msra.mxu0 0.0
      %1156 = vmatprep.subr.mxu0 0.0
      %1157 = vmatpush1.msra.mxu0 0.0
      %1158 = vmatprep.subr.mxu0 0.0
      %1159 = vmatpush1.msra.mxu0 0.0
      %1160 = vmatprep.subr.mxu0 0.0
      %1161 = vmatpush1.msra.mxu0 0.0
      %1162 = vmatprep.subr.mxu0 0.0
      %1163 = vmatpush1.msra.mxu0 0.0
      %1164 = vmatprep.subr.mxu0 0.0
      %1165 = vmatpush1.msra.mxu0 0.0
      %1166 = vmatprep.subr.mxu0 0.0
      %1167 = vmatpush1.msra.mxu0 0.0
      %1168 = vmatprep.subr.mxu0 0.0
      %1169 = vmatpush1.msra.mxu0 0.0
      %1170 = vmatprep.subr.mxu0 0.0
      %1171 = vmatpush1.msra.mxu0 0.0
      %1172 = vmatprep.subr.mxu0 0.0
      %1173 = vmatpush1.msra.mxu0 0.0
      %1174 = vmatprep.subr.mxu0 0.0
      %1175 = vmatpush1.msra.mxu0 0.0
      %1176 = vmatprep.subr.mxu0 0.0
      %1177 = vmatpush1.msra.mxu0 0.0
      %1178 = vmatprep.subr.mxu0 0.0
      %1179 = vmatpush1.msra.mxu0 0.0
      %1180 = vmatprep.subr.mxu0 0.0
      %1181 = vmatpush1.msra.mxu0 0.0
      %1182 = vmatprep.subr.mxu0 0.0
      %1183 = vmatpush1.msra.mxu0 0.0
      %1184 = vmatprep.subr.mxu0 0.0
      %1185 = vmatpush1.msra.mxu0 0.0
      %1186 = vmatprep.subr.mxu0 0.0
      %1187 = vmatpush1.msra.mxu0 0.0
      %1188 = vmatprep.subr.mxu0 0.0
      %1189 = vmatpush1.msra.mxu0 0.0
      %1190 = vmatprep.subr.mxu0 0.0
      %1191 = vmatpush1.msra.mxu0 0.0
      %1192 = vmatprep.subr.mxu0 0.0
      %1193 = vmatpush1.msra.mxu0 0.0
      %1194 = vmatprep.subr.mxu0 0.0
      %1195 = vmatpush1.msra.mxu0 0.0
      %1196 = vmatprep.subr.mxu0 0.0
      %1197 = vmatpush1.msra.mxu0 0.0
      %1198 = vmatprep.subr.mxu0 0.0
      %1199 = vmatpush1.msra.mxu0 0.0
      %1200 = vmatprep.mubr.f32.mxu0 0.0
      %1201 = vmatmul.mubr.f32.gmra.mrb[0].mxu0 %v1134
      %v1202 = vpop.f32.mrb[0].mxu0
      %v1203 = vadd.f32 0.0, %v1202
      %v1204 = vpop.f32.mrb[0].mxu0
      %1205 = vdwg.mxu0
      %v1207 = vrot.slane %v1203, 2
      %v1209 = vadd.f32 %v69, %v1207
      %v1210 = vxor.u32 %v1209, 2147483648
      %v1211 = vmul.f32 %v1210, 1.442695
      %v1212 = vpow.pop %v1211
      %v1213 = vadd.f32 %v1212, 1.0
      %v1214 = vrcp.pop %v1213
      %v1215 = vmul.f32 1.0, %v1214
      %v1216 = vtanh.pop %v1209
      %v1218 = vrot.slane %v909, 6
      %v1220 = vmul.f32 %v1215, %v1218
      %1222 = vrot.lane.b32.xlu0 %v1216, 64
      %v1223 = vpop.permute.xlu0 %1222
      %v1225 = vmul.f32 %v1215, %v1223
      %1227 = vrot.lane.b32.xlu0 %v1225, 32
      %v1228 = vpop.permute.xlu0 %1227
      %v1230 = vadd.f32 %v1220, %v1228
      %v1231 = vtanh.pop %v1230
      %1233 = vrot.lane.b32.xlu0 %v1231, 64
      %v1234 = vpop.permute.xlu0 %1233
      %v1236 = vmul.f32 %v1215, %v1234
      %v1238 = vrot.slane %v1022, 4
      %1239 = vrot.lane.b32.xlu0 %v1238, 32
      %v1240 = vpop.permute.xlu0 %1239
      %v1241 = vsel %vm75, %v1240, 0
      %1243 = vmatprep.subr.mxu0 0.0
      %1244 = vmatpush1.msra.mxu0 %v50
      %1245 = vmatprep.subr.mxu0 0.0
      %1246 = vmatpush1.msra.mxu0 %v51
      %1247 = vmatprep.subr.mxu0 0.0
      %1248 = vmatpush1.msra.mxu0 %v52
      %1249 = vmatprep.subr.mxu0 0.0
      %1250 = vmatpush1.msra.mxu0 %v53
      %1251 = vmatprep.subr.mxu0 0.0
      %1252 = vmatpush1.msra.mxu0 0.0
      %1253 = vmatprep.subr.mxu0 0.0
      %1254 = vmatpush1.msra.mxu0 0.0
      %1255 = vmatprep.subr.mxu0 0.0
      %1256 = vmatpush1.msra.mxu0 0.0
      %1257 = vmatprep.subr.mxu0 0.0
      %1258 = vmatpush1.msra.mxu0 0.0
      %1259 = vmatprep.subr.mxu0 0.0
      %1260 = vmatpush1.msra.mxu0 0.0
      %1261 = vmatprep.subr.mxu0 0.0
      %1262 = vmatpush1.msra.mxu0 0.0
      %1263 = vmatprep.subr.mxu0 0.0
      %1264 = vmatpush1.msra.mxu0 0.0
      %1265 = vmatprep.subr.mxu0 0.0
      %1266 = vmatpush1.msra.mxu0 0.0
      %1267 = vmatprep.subr.mxu0 0.0
      %1268 = vmatpush1.msra.mxu0 0.0
      %1269 = vmatprep.subr.mxu0 0.0
      %1270 = vmatpush1.msra.mxu0 0.0
      %1271 = vmatprep.subr.mxu0 0.0
      %1272 = vmatpush1.msra.mxu0 0.0
      %1273 = vmatprep.subr.mxu0 0.0
      %1274 = vmatpush1.msra.mxu0 0.0
      %1275 = vmatprep.subr.mxu0 0.0
      %1276 = vmatpush1.msra.mxu0 0.0
      %1277 = vmatprep.subr.mxu0 0.0
      %1278 = vmatpush1.msra.mxu0 0.0
      %1279 = vmatprep.subr.mxu0 0.0
      %1280 = vmatpush1.msra.mxu0 0.0
      %1281 = vmatprep.subr.mxu0 0.0
      %1282 = vmatpush1.msra.mxu0 0.0
      %1283 = vmatprep.subr.mxu0 0.0
      %1284 = vmatpush1.msra.mxu0 0.0
      %1285 = vmatprep.subr.mxu0 0.0
      %1286 = vmatpush1.msra.mxu0 0.0
      %1287 = vmatprep.subr.mxu0 0.0
      %1288 = vmatpush1.msra.mxu0 0.0
      %1289 = vmatprep.subr.mxu0 0.0
      %1290 = vmatpush1.msra.mxu0 0.0
      %1291 = vmatprep.subr.mxu0 0.0
      %1292 = vmatpush1.msra.mxu0 0.0
      %1293 = vmatprep.subr.mxu0 0.0
      %1294 = vmatpush1.msra.mxu0 0.0
      %1295 = vmatprep.subr.mxu0 0.0
      %1296 = vmatpush1.msra.mxu0 0.0
      %1297 = vmatprep.subr.mxu0 0.0
      %1298 = vmatpush1.msra.mxu0 0.0
      %1299 = vmatprep.subr.mxu0 0.0
      %1300 = vmatpush1.msra.mxu0 0.0
      %1301 = vmatprep.subr.mxu0 0.0
      %1302 = vmatpush1.msra.mxu0 0.0
      %1303 = vmatprep.subr.mxu0 0.0
      %1304 = vmatpush1.msra.mxu0 0.0
      %1305 = vmatprep.subr.mxu0 0.0
      %1306 = vmatpush1.msra.mxu0 0.0
      %1307 = vmatprep.mubr.f32.mxu0 0.0
      %1308 = vmatmul.mubr.f32.gmra.mrb[0].mxu0 %v1241
      %v1309 = vpop.f32.mrb[0].mxu0
      %v1310 = vadd.f32 0.0, %v1309
      %v1311 = vpop.f32.mrb[0].mxu0
      %1312 = vdwg.mxu0
      %v1314 = vrot.slane %v1310, 2
      %v1316 = vadd.f32 %v70, %v1314
      %v1317 = vxor.u32 %v1316, 2147483648
      %v1318 = vmul.f32 %v1317, 1.442695
      %v1319 = vpow.pop %v1318
      %v1320 = vadd.f32 %v1319, 1.0
      %v1321 = vrcp.pop %v1320
      %v1322 = vmul.f32 1.0, %v1321
      %v1323 = vtanh.pop %v1316
      %v1325 = vrot.slane %v1016, 6
      %v1327 = vmul.f32 %v1322, %v1325
      %1329 = vrot.lane.b32.xlu0 %v1323, 64
      %v1330 = vpop.permute.xlu0 %1329
      %v1332 = vmul.f32 %v1322, %v1330
      %1334 = vrot.lane.b32.xlu0 %v1332, 32
      %v1335 = vpop.permute.xlu0 %1334
      %v1337 = vadd.f32 %v1327, %v1335
      %v1338 = vtanh.pop %v1337
      %1340 = vrot.lane.b32.xlu0 %v1338, 64
      %v1341 = vpop.permute.xlu0 %1340
      %v1343 = vmul.f32 %v1322, %v1341
      %1345 = vrot.lane.b32.xlu0 %v703, 64
      %v1346 = vpop.permute.xlu0 %1345
      %1348 = vrot.lane.b32.xlu0 %v1024, 96
      %v1349 = vpop.permute.xlu0 %1348
      %v1352 = vrot.slane %v1129, 6
      %v1354 = vsel %vm75, %v386, %v1346
      %vm1355 = vcmask 523264
      %v1356 = vsel %vm1355, %v1354, %v1349
      %vm1357 = vcmask 785408
      %v1358 = vsel %vm1357, %v1356, %v1352
      %1360 = vrot.lane.b32.xlu0 %v810, 64
      %v1361 = vpop.permute.xlu0 %1360
      %1363 = vrot.lane.b32.xlu0 %v1131, 96
      %v1364 = vpop.permute.xlu0 %1363
      %v1367 = vrot.slane %v1236, 6
      %v1369 = vsel %vm75, %v492, %v1361
      %v1370 = vsel %vm1355, %v1369, %v1364
      %v1371 = vsel %vm1357, %v1370, %v1367
      %1373 = vrot.lane.b32.xlu0 %v917, 64
      %v1374 = vpop.permute.xlu0 %1373
      %1376 = vrot.lane.b32.xlu0 %v1238, 96
      %v1377 = vpop.permute.xlu0 %1376
      %v1380 = vrot.slane %v1343, 6
      %v1382 = vsel %vm75, %v598, %v1374
      %v1383 = vsel %vm1355, %v1382, %v1377
      %v1384 = vsel %vm1357, %v1383, %v1380
      %s1385 = smul.u32 %s55, 6
      %s1386 = scalar_lea.vmem [#allocation7], %s1385
      %1387 = vst [vmem:[%s1386] sm:$0x3] %v1358
      %1388 = vst [vmem:[%s1386 + $0x2] sm:$0x3] %v1371
      %1389 = vst [vmem:[%s1386 + $0x4] sm:$0x3] %v1384
    $region22: #{tpu_custom_call.1} parent=1 // loop_footer
      %s59 = sadd.s32 1, %s55
    $region23: #{tpu_custom_call.1} parent=1 // loop_footer_branch
      %54 = sbr.rel target = $region19
    $region24: #{tpu_custom_call.1} parent=1 // loop_exit
      _
    // Predicated region
    $region25: #{tpu_custom_call.1} parent=1 // pred_check
      _
    $region26: #{tpu_custom_call.1} parent=1 // pred_check_branch
      %1391 = sbr.rel (0) target = $region28
    $region27: #{tpu_custom_call.1} parent=1 // pred_region
      %s1393 = ssub.s32 1536, 1536
      %1394 = vsyncadd [#allocation4], %s1393
      %s1395 = sshll.u32 [#allocation7], 4
      %s1396 = int_to_ptr.vmem [resolvable:$true] %s1395
      %1401 = dma.vmem_to_hbm [thread:$0]  %s1396, 1536, %s2, [#allocation4], 32, 32, 2
    $region28: #{tpu_custom_call.1} parent=1 // pred_fallthru
      _
    // Predicated region
    $region29: #{tpu_custom_call.1} parent=1 // pred_check
      _
    $region30: #{tpu_custom_call.1} parent=1 // pred_check_branch
      %1403 = sbr.rel (0) target = $region32
    $region31: #{tpu_custom_call.1} parent=1 // pred_region
      %1404 = dma.done [#allocation4], 1536
    $region32: #{tpu_custom_call.1} parent=1 // pred_fallthru
      _
    %1405 = vsyncpa [#allocation3], 1
    %1406 = vsyncpa [#allocation6], 1
    %1407 = vsyncpa [#allocation4], 1

</llo_original>
